<compile_context>
chip_gen: v6e
topology: v6e:2x2x1
jax: 0.10.0
libtpu: 0.0.40
codegen_flags: <defaults>
</compile_context>

<pallas_src>
import functools
import math

import jax
import jax.numpy as jnp
from jax.experimental import pallas as pl
from jax.experimental.pallas import tpu as pltpu

_BN_EPS = 1e-5
_NORM_EPS_SQ = 1e-24        # (1e-12)^2: clamp on ||z||^2 == torch's clamp on ||z||
_VMEM_BUDGET = 48 << 20     # conservative: ~75% of v7x's 64 MiB physical VMEM


def _round_up(n, m):
    return ((n + m - 1) // m) * m


def _fused_kernel(x_ref, w1_ref, w2_ref, o_ref, stats_ref, h_ref=None, *,
                  inv_n, true_b, masked):
    """grid = (phase, batch_tile).
    phase 0: h = cls @ W1 per tile (bf16 MXU, f32 acc); optionally stash h in
             the h_ref scratch; accumulate masked (sum, sumsq) into stats_ref;
             finalize to (mean, rstd) on the last tile.
    phase 1: (re)load h, apply BN(mean,rstd) -> ReLU -> W2 -> L2 normalize."""
    p = pl.program_id(0)           # 0 = stats pass, 1 = apply pass
    i = pl.program_id(1)           # batch tile
    bb = x_ref.shape[0]            # batch tile size (static)

    @pl.when(p == 0)
    def _stats_phase():
        @pl.when(i == 0)
        def _init():
            stats_ref[...] = jnp.zeros(stats_ref.shape, stats_ref.dtype)

        cls = x_ref[...].astype(jnp.bfloat16)                    # bf16 MXU operand
        h = jnp.dot(cls, w1_ref[...], preferred_element_type=jnp.float32)
        # b1 intentionally omitted: cancels exactly under batch-stat BN.

        if h_ref is not None:  # carry h across phases: matmul-1 done only once.
            h_ref[pl.ds(pl.multiple_of(i * bb, 8), bb), :] = h

        if masked:  # ragged last tile: padded rows must not bias the statistics
            row = i * bb + jax.lax.broadcasted_iota(jnp.int32, (bb, 1), 0)
            h = jnp.where(row < true_b, h, 0.0)

        # Single stacked (2, H) read-modify-write instead of two (1, H) updates.
        upd = jnp.concatenate(
            [jnp.sum(h, axis=0, keepdims=True),
             jnp.sum(h * h, axis=0, keepdims=True)], axis=0)
        stats_ref[0:2, :] += upd

        @pl.when(i == pl.num_programs(1) - 1)
        def _finalize():
            mean = stats_ref[0:1, :] * inv_n
            var = stats_ref[1:2, :] * inv_n - mean * mean        # biased (training BN)
            stats_ref[0:1, :] = mean
            stats_ref[1:2, :] = jax.lax.rsqrt(jnp.maximum(var, 0.0) + _BN_EPS)

    @pl.when(p == 1)
    def _apply_phase():
        if h_ref is not None:
            h = h_ref[pl.ds(pl.multiple_of(i * bb, 8), bb), :]
        else:
            # Fallback for very large B*H: recompute matmul-1 (x re-fetched).
            cls = x_ref[...].astype(jnp.bfloat16)
            h = jnp.dot(cls, w1_ref[...], preferred_element_type=jnp.float32)
        # BatchNorm1d apply (gamma=1, beta=0), f32 on the VPU.
        h = (h - stats_ref[0:1, :]) * stats_ref[1:2, :]
        h = jnp.maximum(h, 0.0)                                  # ReLU
        z = jnp.dot(h.astype(jnp.bfloat16), w2_ref[...],
                    preferred_element_type=jnp.float32)
        # F.normalize(dim=1): z / max(||z||, 1e-12) == z * rsqrt(max(||z||^2, 1e-24))
        sumsq = jnp.sum(z * z, axis=1, keepdims=True)
        o_ref[...] = (z * jax.lax.rsqrt(jnp.maximum(sumsq, _NORM_EPS_SQ))
                      ).astype(o_ref.dtype)


def prepare_params(w1, b1, w2):
    """One-time (per checkpoint) conversion from torch layout to kernel layout:
    (in, out) bf16 matmul operands.  b1 is dropped: with training-mode
    BatchNorm (batch stats, gamma=1, beta=0) any per-feature bias cancels
    exactly in (h - mean) and does not change the variance; it is also
    zero-initialized by init_weights.  Keep b1 if an eval-mode/running-stats
    path is ever added."""
    del b1
    w1_t = jnp.asarray(w1, jnp.float32).T.astype(jnp.bfloat16)   # (E, H)
    w2_t = jnp.asarray(w2, jnp.float32).T.astype(jnp.bfloat16)   # (H, P)
    return w1_t, w2_t


def _select_tiling(B, E, H, P, block_b):
    """Pick (block_b, num_tiles, padded_B, carry_h) against the VMEM budget."""
    b_ceil = _round_up(max(B, 1), 8)
    if block_b is not None:
        candidates = [min(_round_up(block_b, 8), b_ceil)]
    else:
        candidates = [min(c, b_ceil) for c in (1024, 512, 256, 128, 64, 32, 16, 8)]
    weight_vmem = 2 * 2 * (E * H + H * P)        # bf16 W1+W2, worst case double-buffered
    stats_vmem = 8 * H * 4
    bb = n_tiles = b_pad = carry = None
    for cand in candidates:
        bb = cand
        n_tiles = pl.cdiv(B, bb)
        b_pad = n_tiles * bb
        carry = b_pad * H * 4 <= _VMEM_BUDGET // 2       # carry h across phases?
        act_vmem = 2 * bb * E * 4 + 2 * bb * P * 4 + (b_pad * H * 4 if carry else 0)
        if weight_vmem + stats_vmem + act_vmem <= _VMEM_BUDGET:
            break
    return bb, n_tiles, b_pad, carry


def contrastive_proj(x, w1_t, w2_t, *, block_b=None, out_dtype=jnp.float32):
    """x: (B, S, E) f32.  w1_t: (E, H) bf16.  w2_t: (H, P) bf16.
    Returns (B, P) out_dtype, each row L2-normalized."""
    B, S, E = x.shape
    H = w1_t.shape[1]
    P = w2_t.shape[1]

    block_b, num_tiles, b_pad, carry_h = _select_tiling(B, E, H, P, block_b)

    if E % 128 == 0:
        # Free reshape (no data movement): the (block_b, E) block at column
        # block 0 of the flat (B, S*E) view is exactly the CLS token of each
        # row, so the DMA engine fetches only the CLS rows from HBM.
        x_in = x.reshape(B, S * E)
    else:
        # TODO(synk): lane-unaligned E -- fall back to an XLA slice of the CLS token.
        x_in = x[:, 0, :]

    if carry_h:
        # Phase 1 never touches x: pin its block index to the last phase-0
        # block so the pipeline issues no new x DMA during phase 1.
        x_index = lambda p, i: ((1 - p) * i + p * (num_tiles - 1), 0)
    else:
        x_index = lambda p, i: (i, 0)
    x_spec = pl.BlockSpec((block_b, E), x_index)

    # Output is written only in phase 1; holding its block index at 0 during
    # phase 0 (never changing) avoids any spurious write-back of unwritten data.
    o_spec = pl.BlockSpec((block_b, P), lambda p, i: (p * i, 0))

    scratch = [pltpu.VMEM((8, H), jnp.float32)]          # rows 0/1: sum|mean, sumsq|rstd
    if carry_h:
        scratch.append(pltpu.VMEM((b_pad, H), jnp.float32))

    kernel = functools.partial(
        _fused_kernel, inv_n=1.0 / B, true_b=B, masked=(b_pad != B))

    # Explicit VMEM budget (weights worst-case double-buffered + activations +
    # scratch), with headroom for Mosaic-internal scratch.
    weight_vmem = 2 * 2 * (E * H + H * P)
    act_vmem = (2 * block_b * E * 4 + 2 * block_b * P * 4 + 8 * H * 4
                + (b_pad * H * 4 if carry_h else 0))
    vmem_limit = min(128 << 20, max(32 << 20, int(1.5 * (weight_vmem + act_vmem))))

    def _build(buffered_weights):
        w_mode = {}
        if buffered_weights:
            # Constant-index weight blocks never re-DMA; a single buffer halves
            # their VMEM footprint.
            w_mode = dict(pipeline_mode=pl.Buffered(1))
        w1_spec = pl.BlockSpec((E, H), lambda p, i: (0, 0), **w_mode)
        w2_spec = pl.BlockSpec((H, P), lambda p, i: (0, 0), **w_mode)
        return pl.pallas_call(
            kernel,
            grid=(2, num_tiles),
            in_specs=[x_spec, w1_spec, w2_spec],
            out_specs=o_spec,
            out_shape=jax.ShapeDtypeStruct((B, P), out_dtype),
            scratch_shapes=scratch,
            compiler_params=pltpu.CompilerParams(
                # Both axes carry dependencies (stats accumulation, then
                # phase-1 consuming the finalized stats) -> sequential.
                dimension_semantics=("arbitrary", "arbitrary"),
                vmem_limit_bytes=vmem_limit),
        )

    try:
        return _build(True)(x_in, w1_t, w2_t)
    except Exception:
        # pipeline_mode=pl.Buffered(1) not supported by this jax/Mosaic build:
        # rebuild with default (double-buffered) weight windows.
        return _build(False)(x_in, w1_t, w2_t)


def _kaiming_uniform(key, out_features, in_features):
    # nn.init.kaiming_uniform_ default: bound = sqrt(2) * sqrt(3 / fan_in).
    bound = math.sqrt(6.0 / in_features)
    return jax.random.uniform(
        key, (out_features, in_features), jnp.float32, minval=-bound, maxval=bound)


def reference_forward_mixed(x, w1, b1, w2):
    """Pure-JAX reference mirroring the kernel's precision choices
    (bf16 matmul operands, f32 accumulation, uncentered-variance BN)."""
    cls = x[:, 0, :]
    h = jnp.dot(cls.astype(jnp.bfloat16), w1.T.astype(jnp.bfloat16),
                preferred_element_type=jnp.float32) + b1
    inv_n = 1.0 / h.shape[0]
    mean = jnp.sum(h, axis=0, keepdims=True) * inv_n
    var = jnp.sum(h * h, axis=0, keepdims=True) * inv_n - mean * mean
    h = (h - mean) * jax.lax.rsqrt(jnp.maximum(var, 0.0) + _BN_EPS)
    h = jnp.maximum(h, 0.0)
    z = jnp.dot(h.astype(jnp.bfloat16), w2.T.astype(jnp.bfloat16),
                preferred_element_type=jnp.float32)
    sumsq = jnp.sum(z * z, axis=1, keepdims=True)
    return z * jax.lax.rsqrt(jnp.maximum(sumsq, _NORM_EPS_SQ))


def reference_forward_f32(x, w1, b1, w2):
    """Exact f32 reference of the torch module (semantic fidelity check)."""
    cls = x[:, 0, :]
    h = cls @ w1.T + b1
    mean = jnp.mean(h, axis=0, keepdims=True)
    var = jnp.mean(jnp.square(h - mean), axis=0, keepdims=True)
    h = (h - mean) / jnp.sqrt(var + _BN_EPS)
    h = jnp.maximum(h, 0.0)
    z = h @ w2.T
    norm = jnp.maximum(jnp.sqrt(jnp.sum(z * z, axis=1, keepdims=True)), 1e-12)
    return z / norm


if __name__ == "__main__":
    # Small shapes consistent with the module (embedding_dim=E, hidden_dim=H,
    # projected_dim=P).  B=20 is deliberately NOT a multiple of the batch tile
    # to exercise the masked ragged-last-tile path.
    B, S, E, H, P = 20, 8, 256, 256, 128

    key = jax.random.PRNGKey(0)
    kx, k1, k2 = jax.random.split(key, 3)

    x = jax.random.normal(kx, (B, S, E), jnp.float32)
    w1 = _kaiming_uniform(k1, H, E)          # Linear(E -> H).weight, torch (out, in)
    b1 = jnp.zeros((H,), jnp.float32)        # zeroed by init_weights (and cancels in BN)
    w2 = _kaiming_uniform(k2, P, H)          # Linear(H -> P, bias=False).weight

    # One-time param prep (transpose + bf16 cast), outside the per-call path.
    w1_t, w2_t = prepare_params(w1, b1, w2)

    # Explicit block_b=8 -> grid of (2 phases, 3 batch tiles), last tile ragged.
    out = contrastive_proj(x, w1_t, w2_t, block_b=8)
    out = jax.block_until_ready(out)
    assert out.shape == (B, P)

    ref_mixed = reference_forward_mixed(x, w1, b1, w2)
    assert jnp.allclose(out, ref_mixed, atol=1e-3, rtol=1e-3), \
        "mismatch vs mixed-precision reference"

    ref_f32 = reference_forward_f32(x, w1, b1, w2)
    assert jnp.allclose(out, ref_f32, atol=2e-2, rtol=0), \
        "mismatch vs f32 reference"

    # Rows must be unit-norm.
    assert jnp.allclose(jnp.linalg.norm(out, axis=1), 1.0, atol=1e-4)

    # Also exercise the auto-tiling path (single padded tile here).
    out_auto = jax.block_until_ready(contrastive_proj(x, w1_t, w2_t))
    assert jnp.allclose(out_auto, ref_mixed, atol=1e-3, rtol=1e-3), \
        "auto-tiled path mismatch"

    print("KERNEL_OK")
</pallas_src>

<mosaic_0001>
module attributes {stable_mosaic.version = 11 : i64} {
  func.func @_fused_kernel(%arg0: i32, %arg1: i32, %arg2: memref<8x256xf32, #tpu.memory_space<vmem>>, %arg3: memref<256x256xbf16, #tpu.memory_space<vmem>>, %arg4: memref<256x128xbf16, #tpu.memory_space<vmem>>, %arg5: memref<8x128xf32, #tpu.memory_space<vmem>>, %arg6: memref<8x256xf32, #tpu.memory_space<vmem>>, %arg7: memref<24x256xf32, #tpu.memory_space<vmem>>) attributes {dimension_semantics = [#tpu.dimension_semantics<arbitrary>, #tpu.dimension_semantics<arbitrary>], iteration_bounds = array<i64: 2, 3>, scalar_prefetch = 0 : i64, scratch_operands = 2 : i64, tpu.core_type = #tpu.core_type<tc>, window_params = [{transform_indices = @transform_0, window_bounds = array<i64: 8, 256>}, {pipeline_mode = #tpu.pipeline_mode<synchronous>, transform_indices = @transform_1, window_bounds = array<i64: 256, 256>}, {pipeline_mode = #tpu.pipeline_mode<synchronous>, transform_indices = @transform_2, window_bounds = array<i64: 256, 128>}, {transform_indices = @transform_3, window_bounds = array<i64: 8, 128>}]} {
    %c0_i32 = arith.constant 0 : i32
    %0 = arith.cmpi eq, %arg0, %c0_i32 : i32
    %1 = arith.extui %0 : i1 to i32
    %c0_i32_0 = arith.constant 0 : i32
    %2 = arith.cmpi ne, %1, %c0_i32_0 : i32
    scf.if %2 {
      %c0_i32_2 = arith.constant 0 : i32
      %6 = arith.cmpi eq, %arg1, %c0_i32_2 : i32
      %7 = arith.extui %6 : i1 to i32
      %c0_i32_3 = arith.constant 0 : i32
      %8 = arith.cmpi ne, %7, %c0_i32_3 : i32
      scf.if %8 {
        %cst_17 = arith.constant 0.000000e+00 : f32
        %39 = vector.broadcast %cst_17 : f32 to vector<8x256xf32>
        %c0_18 = arith.constant 0 : index
        %c0_19 = arith.constant 0 : index
        %40 = vector.load %arg6[%c0_18, %c0_19] : memref<8x256xf32, #tpu.memory_space<vmem>>, vector<8x256xf32>
        tpu.vector_store %arg6[%c0_18, %c0_19], %39 {strides = array<i32>} : memref<8x256xf32, #tpu.memory_space<vmem>>, vector<8x256xf32>,
      } else {
      }
      %c0 = arith.constant 0 : index
      %c0_4 = arith.constant 0 : index
      %9 = vector.load %arg2[%c0, %c0_4] : memref<8x256xf32, #tpu.memory_space<vmem>>, vector<8x256xf32>
      %10 = arith.truncf %9 : vector<8x256xf32> to vector<8x256xbf16>
      %c0_5 = arith.constant 0 : index
      %c0_6 = arith.constant 0 : index
      %11 = vector.load %arg3[%c0_5, %c0_6] : memref<256x256xbf16, #tpu.memory_space<vmem>>, vector<256x256xbf16>
      %cst = arith.constant dense<0.000000e+00> : vector<8x256xf32>
      %12 = tpu.matmul %10, %11, %cst {dimension_numbers = #tpu.dot_dimension_numbers<[1], [0], [0], [1], [0, 0, 1, 1], [], []>} : vector<8x256xbf16>, vector<256x256xbf16>, vector<8x256xf32> -> vector<8x256xf32>
      %c8_i32 = arith.constant 8 : i32
      %13 = arith.muli %arg1, %c8_i32 : i32
      %14 = tpu.assume_multiple %13, 8 : i32
      %15 = arith.index_cast %14 : i32 to index
      %c0_7 = arith.constant 0 : index
      %16 = vector.load %arg7[%15, %c0_7] : memref<24x256xf32, #tpu.memory_space<vmem>>, vector<8x256xf32>
      tpu.vector_store %arg7[%15, %c0_7], %12 {strides = array<i32>} : memref<24x256xf32, #tpu.memory_space<vmem>>, vector<8x256xf32>,
      %c8_i32_8 = arith.constant 8 : i32
      %17 = arith.muli %arg1, %c8_i32_8 : i32
      %18 = tpu.iota {dimensions = array<i32: 0>} : vector<8x1xi32>
      %19 = vector.broadcast %17 : i32 to vector<8x1xi32>
      %20 = arith.addi %19, %18 : vector<8x1xi32>
      %c20_i32 = arith.constant 20 : i32
      %21 = vector.broadcast %c20_i32 : i32 to vector<8x1xi32>
      %22 = arith.cmpi slt, %20, %21 : vector<8x1xi32>
      %cst_9 = arith.constant 0.000000e+00 : f32
      %23 = vector.shape_cast %22 : vector<8x1xi1> to vector<8x1xi1>
      %24 = vector.broadcast %23 : vector<8x1xi1> to vector<8x256xi1>
      %25 = vector.broadcast %cst_9 : f32 to vector<8x256xf32>
      %26 = arith.select %24, %12, %25 : vector<8x256xi1>, vector<8x256xf32>
      %cst_10 = arith.constant dense<0.000000e+00> : vector<256xf32>
      %27 = vector.multi_reduction <add>, %26, %cst_10 [0] : vector<8x256xf32> to vector<256xf32>
      %28 = vector.shape_cast %27 : vector<256xf32> to vector<1x256xf32>
      %29 = arith.mulf %26, %26 : vector<8x256xf32>
      %cst_11 = arith.constant dense<0.000000e+00> : vector<256xf32>
      %30 = vector.multi_reduction <add>, %29, %cst_11 [0] : vector<8x256xf32> to vector<256xf32>
      %31 = vector.shape_cast %30 : vector<256xf32> to vector<1x256xf32>
      %32 = tpu.concatenate %28, %31 in 0 : vector<1x256xf32>, vector<1x256xf32> -> vector<2x256xf32>
      %c0_12 = arith.constant 0 : index
      %c0_13 = arith.constant 0 : index
      %33 = vector.load %arg6[%c0_12, %c0_13] : memref<8x256xf32, #tpu.memory_space<vmem>>, vector<2x256xf32>
      %34 = arith.addf %33, %32 : vector<2x256xf32>
      %c0_14 = arith.constant 0 : index
      %c0_15 = arith.constant 0 : index
      %35 = vector.load %arg6[%c0_14, %c0_15] : memref<8x256xf32, #tpu.memory_space<vmem>>, vector<2x256xf32>
      tpu.vector_store %arg6[%c0_14, %c0_15], %34 {strides = array<i32>} : memref<8x256xf32, #tpu.memory_space<vmem>>, vector<2x256xf32>,
      %c2_i32 = arith.constant 2 : i32
      %36 = arith.cmpi eq, %arg1, %c2_i32 : i32
      %37 = arith.extui %36 : i1 to i32
      %c0_i32_16 = arith.constant 0 : i32
      %38 = arith.cmpi ne, %37, %c0_i32_16 : i32
      scf.if %38 {
        %c0_17 = arith.constant 0 : index
        %c0_18 = arith.constant 0 : index
        %39 = vector.load %arg6[%c0_17, %c0_18] : memref<8x256xf32, #tpu.memory_space<vmem>>, vector<1x256xf32>
        %cst_19 = arith.constant 5.000000e-02 : f32
        %40 = vector.broadcast %cst_19 : f32 to vector<1x256xf32>
        %41 = arith.mulf %39, %40 : vector<1x256xf32>
        %c1 = arith.constant 1 : index
        %c0_20 = arith.constant 0 : index
        %42 = vector.load %arg6[%c1, %c0_20] : memref<8x256xf32, #tpu.memory_space<vmem>>, vector<1x256xf32>
        %cst_21 = arith.constant 5.000000e-02 : f32
        %43 = vector.broadcast %cst_21 : f32 to vector<1x256xf32>
        %44 = arith.mulf %42, %43 : vector<1x256xf32>
        %45 = arith.mulf %41, %41 : vector<1x256xf32>
        %46 = arith.subf %44, %45 : vector<1x256xf32>
        %c0_22 = arith.constant 0 : index
        %c0_23 = arith.constant 0 : index
        %47 = vector.load %arg6[%c0_22, %c0_23] : memref<8x256xf32, #tpu.memory_space<vmem>>, vector<1x256xf32>
        tpu.vector_store %arg6[%c0_22, %c0_23], %41 {strides = array<i32>} : memref<8x256xf32, #tpu.memory_space<vmem>>, vector<1x256xf32>,
        %cst_24 = arith.constant 0.000000e+00 : f32
        %48 = vector.broadcast %cst_24 : f32 to vector<1x256xf32>
        %49 = arith.maximumf %46, %48 : vector<1x256xf32>
        %cst_25 = arith.constant 9.99999974E-6 : f32
        %50 = vector.broadcast %cst_25 : f32 to vector<1x256xf32>
        %51 = arith.addf %49, %50 : vector<1x256xf32>
        %52 = math.rsqrt %51 : vector<1x256xf32>
        %c1_26 = arith.constant 1 : index
        %c0_27 = arith.constant 0 : index
        %53 = vector.load %arg6[%c1_26, %c0_27] : memref<8x256xf32, #tpu.memory_space<vmem>>, vector<1x256xf32>
        tpu.vector_store %arg6[%c1_26, %c0_27], %52 {strides = array<i32>} : memref<8x256xf32, #tpu.memory_space<vmem>>, vector<1x256xf32>,
      } else {
      }
    } else {
    }
    %c1_i32 = arith.constant 1 : i32
    %3 = arith.cmpi eq, %arg0, %c1_i32 : i32
    %4 = arith.extui %3 : i1 to i32
    %c0_i32_1 = arith.constant 0 : i32
    %5 = arith.cmpi ne, %4, %c0_i32_1 : i32
    scf.if %5 {
      %c8_i32 = arith.constant 8 : i32
      %6 = arith.muli %arg1, %c8_i32 : i32
      %7 = tpu.assume_multiple %6, 8 : i32
      %8 = arith.index_cast %7 : i32 to index
      %c0 = arith.constant 0 : index
      %9 = vector.load %arg7[%8, %c0] : memref<24x256xf32, #tpu.memory_space<vmem>>, vector<8x256xf32>
      %c0_2 = arith.constant 0 : index
      %c0_3 = arith.constant 0 : index
      %10 = vector.load %arg6[%c0_2, %c0_3] : memref<8x256xf32, #tpu.memory_space<vmem>>, vector<1x256xf32>
      %11 = vector.broadcast %10 : vector<1x256xf32> to vector<8x256xf32>
      %12 = arith.subf %9, %11 : vector<8x256xf32>
      %c1 = arith.constant 1 : index
      %c0_4 = arith.constant 0 : index
      %13 = vector.load %arg6[%c1, %c0_4] : memref<8x256xf32, #tpu.memory_space<vmem>>, vector<1x256xf32>
      %14 = vector.broadcast %13 : vector<1x256xf32> to vector<8x256xf32>
      %15 = arith.mulf %12, %14 : vector<8x256xf32>
      %cst = arith.constant 0.000000e+00 : f32
      %16 = vector.broadcast %cst : f32 to vector<8x256xf32>
      %17 = arith.maximumf %15, %16 : vector<8x256xf32>
      %18 = arith.truncf %17 : vector<8x256xf32> to vector<8x256xbf16>
      %c0_5 = arith.constant 0 : index
      %c0_6 = arith.constant 0 : index
      %19 = vector.load %arg4[%c0_5, %c0_6] : memref<256x128xbf16, #tpu.memory_space<vmem>>, vector<256x128xbf16>
      %cst_7 = arith.constant dense<0.000000e+00> : vector<8x128xf32>
      %20 = tpu.matmul %18, %19, %cst_7 {dimension_numbers = #tpu.dot_dimension_numbers<[1], [0], [0], [1], [0, 0, 1, 1], [], []>} : vector<8x256xbf16>, vector<256x128xbf16>, vector<8x128xf32> -> vector<8x128xf32>
      %21 = arith.mulf %20, %20 : vector<8x128xf32>
      %cst_8 = arith.constant dense<0.000000e+00> : vector<8xf32>
      %22 = vector.multi_reduction <add>, %21, %cst_8 [1] : vector<8x128xf32> to vector<8xf32>
      %23 = vector.shape_cast %22 : vector<8xf32> to vector<8x1xf32>
      %cst_9 = arith.constant 1.000000e-24 : f32
      %24 = vector.broadcast %cst_9 : f32 to vector<8x1xf32>
      %25 = arith.maximumf %23, %24 : vector<8x1xf32>
      %26 = math.rsqrt %25 : vector<8x1xf32>
      %27 = vector.broadcast %26 : vector<8x1xf32> to vector<8x128xf32>
      %28 = arith.mulf %20, %27 : vector<8x128xf32>
      %c0_10 = arith.constant 0 : index
      %c0_11 = arith.constant 0 : index
      %29 = vector.load %arg5[%c0_10, %c0_11] : memref<8x128xf32, #tpu.memory_space<vmem>>, vector<8x128xf32>
      tpu.vector_store %arg5[%c0_10, %c0_11], %28 {strides = array<i32>} : memref<8x128xf32, #tpu.memory_space<vmem>>, vector<8x128xf32>,
    } else {
    }
    return
  }
  func.func @transform_0(%arg0: i32, %arg1: i32) -> (i32, i32) {
    %c1_i32 = arith.constant 1 : i32
    %0 = arith.subi %c1_i32, %arg0 : i32
    %1 = arith.muli %0, %arg1 : i32
    %c2_i32 = arith.constant 2 : i32
    %2 = arith.muli %arg0, %c2_i32 : i32
    %3 = arith.addi %1, %2 : i32
    %c0_i32 = arith.constant 0 : i32
    %c0_i32_0 = arith.constant 0 : i32
    return %3, %c0_i32 : i32, i32
  }
  func.func @transform_1(%arg0: i32, %arg1: i32) -> (i32, i32) {
    %c0_i32 = arith.constant 0 : i32
    %c0_i32_0 = arith.constant 0 : i32
    %c0_i32_1 = arith.constant 0 : i32
    return %c0_i32, %c0_i32_0 : i32, i32
  }
  func.func @transform_2(%arg0: i32, %arg1: i32) -> (i32, i32) {
    %c0_i32 = arith.constant 0 : i32
    %c0_i32_0 = arith.constant 0 : i32
    %c0_i32_1 = arith.constant 0 : i32
    return %c0_i32, %c0_i32_0 : i32, i32
  }
  func.func @transform_3(%arg0: i32, %arg1: i32) -> (i32, i32) {
    %0 = arith.muli %arg0, %arg1 : i32
    %c0_i32 = arith.constant 0 : i32
    %c0_i32_0 = arith.constant 0 : i32
    return %0, %c0_i32 : i32, i32
  }
}

module attributes {stable_mosaic.version = 11 : i64} {
  func.func @_fused_kernel(%arg0: i32, %arg1: i32, %arg2: memref<8x256xf32, #tpu.memory_space<vmem>>, %arg3: memref<256x256xbf16, #tpu.memory_space<vmem>>, %arg4: memref<256x128xbf16, #tpu.memory_space<vmem>>, %arg5: memref<8x128xf32, #tpu.memory_space<vmem>>, %arg6: memref<8x256xf32, #tpu.memory_space<vmem>>, %arg7: memref<24x256xf32, #tpu.memory_space<vmem>>) attributes {dimension_semantics = [#tpu.dimension_semantics<arbitrary>, #tpu.dimension_semantics<arbitrary>], iteration_bounds = array<i64: 2, 3>, scalar_prefetch = 0 : i64, scratch_operands = 2 : i64, tpu.core_type = #tpu.core_type<tc>, window_params = [{transform_indices = @transform_0, window_bounds = array<i64: 8, 256>}, {pipeline_mode = #tpu.pipeline_mode<synchronous>, transform_indices = @transform_1, window_bounds = array<i64: 256, 256>}, {pipeline_mode = #tpu.pipeline_mode<synchronous>, transform_indices = @transform_2, window_bounds = array<i64: 256, 128>}, {transform_indices = @transform_3, window_bounds = array<i64: 8, 128>}]} {
    %c0_i32 = arith.constant 0 : i32
    %0 = arith.cmpi eq, %arg0, %c0_i32 : i32
    %1 = arith.extui %0 : i1 to i32
    %c0_i32_0 = arith.constant 0 : i32
    %2 = arith.cmpi ne, %1, %c0_i32_0 : i32
    scf.if %2 {
      %c0_i32_2 = arith.constant 0 : i32
      %6 = arith.cmpi eq, %arg1, %c0_i32_2 : i32
      %7 = arith.extui %6 : i1 to i32
      %c0_i32_3 = arith.constant 0 : i32
      %8 = arith.cmpi ne, %7, %c0_i32_3 : i32
      scf.if %8 {
        %cst_17 = arith.constant 0.000000e+00 : f32
        %39 = vector.broadcast %cst_17 : f32 to vector<8x256xf32>
        %c0_18 = arith.constant 0 : index
        %c0_19 = arith.constant 0 : index
        %40 = vector.load %arg6[%c0_18, %c0_19] : memref<8x256xf32, #tpu.memory_space<vmem>>, vector<8x256xf32>
        tpu.vector_store %arg6[%c0_18, %c0_19], %39 {strides = array<i32>} : memref<8x256xf32, #tpu.memory_space<vmem>>, vector<8x256xf32>,
      } else {
      }
      %c0 = arith.constant 0 : index
      %c0_4 = arith.constant 0 : index
      %9 = vector.load %arg2[%c0, %c0_4] : memref<8x256xf32, #tpu.memory_space<vmem>>, vector<8x256xf32>
      %10 = arith.truncf %9 : vector<8x256xf32> to vector<8x256xbf16>
      %c0_5 = arith.constant 0 : index
      %c0_6 = arith.constant 0 : index
      %11 = vector.load %arg3[%c0_5, %c0_6] : memref<256x256xbf16, #tpu.memory_space<vmem>>, vector<256x256xbf16>
      %cst = arith.constant dense<0.000000e+00> : vector<8x256xf32>
      %12 = tpu.matmul %10, %11, %cst {dimension_numbers = #tpu.dot_dimension_numbers<[1], [0], [0], [1], [0, 0, 1, 1], [], []>} : vector<8x256xbf16>, vector<256x256xbf16>, vector<8x256xf32> -> vector<8x256xf32>
      %c8_i32 = arith.constant 8 : i32
      %13 = arith.muli %arg1, %c8_i32 : i32
      %14 = tpu.assume_multiple %13, 8 : i32
      %15 = arith.index_cast %14 : i32 to index
      %c0_7 = arith.constant 0 : index
      %16 = vector.load %arg7[%15, %c0_7] : memref<24x256xf32, #tpu.memory_space<vmem>>, vector<8x256xf32>
      tpu.vector_store %arg7[%15, %c0_7], %12 {strides = array<i32>} : memref<24x256xf32, #tpu.memory_space<vmem>>, vector<8x256xf32>,
      %c8_i32_8 = arith.constant 8 : i32
      %17 = arith.muli %arg1, %c8_i32_8 : i32
      %18 = tpu.iota {dimensions = array<i32: 0>} : vector<8x1xi32>
      %19 = vector.broadcast %17 : i32 to vector<8x1xi32>
      %20 = arith.addi %19, %18 : vector<8x1xi32>
      %c20_i32 = arith.constant 20 : i32
      %21 = vector.broadcast %c20_i32 : i32 to vector<8x1xi32>
      %22 = arith.cmpi slt, %20, %21 : vector<8x1xi32>
      %cst_9 = arith.constant 0.000000e+00 : f32
      %23 = vector.shape_cast %22 : vector<8x1xi1> to vector<8x1xi1>
      %24 = vector.broadcast %23 : vector<8x1xi1> to vector<8x256xi1>
      %25 = vector.broadcast %cst_9 : f32 to vector<8x256xf32>
      %26 = arith.select %24, %12, %25 : vector<8x256xi1>, vector<8x256xf32>
      %cst_10 = arith.constant dense<0.000000e+00> : vector<256xf32>
      %27 = vector.multi_reduction <add>, %26, %cst_10 [0] : vector<8x256xf32> to vector<256xf32>
      %28 = vector.shape_cast %27 : vector<256xf32> to vector<1x256xf32>
      %29 = arith.mulf %26, %26 : vector<8x256xf32>
      %cst_11 = arith.constant dense<0.000000e+00> : vector<256xf32>
      %30 = vector.multi_reduction <add>, %29, %cst_11 [0] : vector<8x256xf32> to vector<256xf32>
      %31 = vector.shape_cast %30 : vector<256xf32> to vector<1x256xf32>
      %32 = tpu.concatenate %28, %31 in 0 : vector<1x256xf32>, vector<1x256xf32> -> vector<2x256xf32>
      %c0_12 = arith.constant 0 : index
      %c0_13 = arith.constant 0 : index
      %33 = vector.load %arg6[%c0_12, %c0_13] : memref<8x256xf32, #tpu.memory_space<vmem>>, vector<2x256xf32>
      %34 = arith.addf %33, %32 : vector<2x256xf32>
      %c0_14 = arith.constant 0 : index
      %c0_15 = arith.constant 0 : index
      %35 = vector.load %arg6[%c0_14, %c0_15] : memref<8x256xf32, #tpu.memory_space<vmem>>, vector<2x256xf32>
      tpu.vector_store %arg6[%c0_14, %c0_15], %34 {strides = array<i32>} : memref<8x256xf32, #tpu.memory_space<vmem>>, vector<2x256xf32>,
      %c2_i32 = arith.constant 2 : i32
      %36 = arith.cmpi eq, %arg1, %c2_i32 : i32
      %37 = arith.extui %36 : i1 to i32
      %c0_i32_16 = arith.constant 0 : i32
      %38 = arith.cmpi ne, %37, %c0_i32_16 : i32
      scf.if %38 {
        %c0_17 = arith.constant 0 : index
        %c0_18 = arith.constant 0 : index
        %39 = vector.load %arg6[%c0_17, %c0_18] : memref<8x256xf32, #tpu.memory_space<vmem>>, vector<1x256xf32>
        %cst_19 = arith.constant 5.000000e-02 : f32
        %40 = vector.broadcast %cst_19 : f32 to vector<1x256xf32>
        %41 = arith.mulf %39, %40 : vector<1x256xf32>
        %c1 = arith.constant 1 : index
        %c0_20 = arith.constant 0 : index
        %42 = vector.load %arg6[%c1, %c0_20] : memref<8x256xf32, #tpu.memory_space<vmem>>, vector<1x256xf32>
        %cst_21 = arith.constant 5.000000e-02 : f32
        %43 = vector.broadcast %cst_21 : f32 to vector<1x256xf32>
        %44 = arith.mulf %42, %43 : vector<1x256xf32>
        %45 = arith.mulf %41, %41 : vector<1x256xf32>
        %46 = arith.subf %44, %45 : vector<1x256xf32>
        %c0_22 = arith.constant 0 : index
        %c0_23 = arith.constant 0 : index
        %47 = vector.load %arg6[%c0_22, %c0_23] : memref<8x256xf32, #tpu.memory_space<vmem>>, vector<1x256xf32>
        tpu.vector_store %arg6[%c0_22, %c0_23], %41 {strides = array<i32>} : memref<8x256xf32, #tpu.memory_space<vmem>>, vector<1x256xf32>,
        %cst_24 = arith.constant 0.000000e+00 : f32
        %48 = vector.broadcast %cst_24 : f32 to vector<1x256xf32>
        %49 = arith.maximumf %46, %48 : vector<1x256xf32>
        %cst_25 = arith.constant 9.99999974E-6 : f32
        %50 = vector.broadcast %cst_25 : f32 to vector<1x256xf32>
        %51 = arith.addf %49, %50 : vector<1x256xf32>
        %52 = math.rsqrt %51 : vector<1x256xf32>
        %c1_26 = arith.constant 1 : index
        %c0_27 = arith.constant 0 : index
        %53 = vector.load %arg6[%c1_26, %c0_27] : memref<8x256xf32, #tpu.memory_space<vmem>>, vector<1x256xf32>
        tpu.vector_store %arg6[%c1_26, %c0_27], %52 {strides = array<i32>} : memref<8x256xf32, #tpu.memory_space<vmem>>, vector<1x256xf32>,
      } else {
      }
    } else {
    }
    %c1_i32 = arith.constant 1 : i32
    %3 = arith.cmpi eq, %arg0, %c1_i32 : i32
    %4 = arith.extui %3 : i1 to i32
    %c0_i32_1 = arith.constant 0 : i32
    %5 = arith.cmpi ne, %4, %c0_i32_1 : i32
    scf.if %5 {
      %c8_i32 = arith.constant 8 : i32
      %6 = arith.muli %arg1, %c8_i32 : i32
      %7 = tpu.assume_multiple %6, 8 : i32
      %8 = arith.index_cast %7 : i32 to index
      %c0 = arith.constant 0 : index
      %9 = vector.load %arg7[%8, %c0] : memref<24x256xf32, #tpu.memory_space<vmem>>, vector<8x256xf32>
      %c0_2 = arith.constant 0 : index
      %c0_3 = arith.constant 0 : index
      %10 = vector.load %arg6[%c0_2, %c0_3] : memref<8x256xf32, #tpu.memory_space<vmem>>, vector<1x256xf32>
      %11 = vector.broadcast %10 : vector<1x256xf32> to vector<8x256xf32>
      %12 = arith.subf %9, %11 : vector<8x256xf32>
      %c1 = arith.constant 1 : index
      %c0_4 = arith.constant 0 : index
      %13 = vector.load %arg6[%c1, %c0_4] : memref<8x256xf32, #tpu.memory_space<vmem>>, vector<1x256xf32>
      %14 = vector.broadcast %13 : vector<1x256xf32> to vector<8x256xf32>
      %15 = arith.mulf %12, %14 : vector<8x256xf32>
      %cst = arith.constant 0.000000e+00 : f32
      %16 = vector.broadcast %cst : f32 to vector<8x256xf32>
      %17 = arith.maximumf %15, %16 : vector<8x256xf32>
      %18 = arith.truncf %17 : vector<8x256xf32> to vector<8x256xbf16>
      %c0_5 = arith.constant 0 : index
      %c0_6 = arith.constant 0 : index
      %19 = vector.load %arg4[%c0_5, %c0_6] : memref<256x128xbf16, #tpu.memory_space<vmem>>, vector<256x128xbf16>
      %cst_7 = arith.constant dense<0.000000e+00> : vector<8x128xf32>
      %20 = tpu.matmul %18, %19, %cst_7 {dimension_numbers = #tpu.dot_dimension_numbers<[1], [0], [0], [1], [0, 0, 1, 1], [], []>} : vector<8x256xbf16>, vector<256x128xbf16>, vector<8x128xf32> -> vector<8x128xf32>
      %21 = arith.mulf %20, %20 : vector<8x128xf32>
      %cst_8 = arith.constant dense<0.000000e+00> : vector<8xf32>
      %22 = vector.multi_reduction <add>, %21, %cst_8 [1] : vector<8x128xf32> to vector<8xf32>
      %23 = vector.shape_cast %22 : vector<8xf32> to vector<8x1xf32>
      %cst_9 = arith.constant 1.000000e-24 : f32
      %24 = vector.broadcast %cst_9 : f32 to vector<8x1xf32>
      %25 = arith.maximumf %23, %24 : vector<8x1xf32>
      %26 = math.rsqrt %25 : vector<8x1xf32>
      %27 = vector.broadcast %26 : vector<8x1xf32> to vector<8x128xf32>
      %28 = arith.mulf %20, %27 : vector<8x128xf32>
      %c0_10 = arith.constant 0 : index
      %c0_11 = arith.constant 0 : index
      %29 = vector.load %arg5[%c0_10, %c0_11] : memref<8x128xf32, #tpu.memory_space<vmem>>, vector<8x128xf32>
      tpu.vector_store %arg5[%c0_10, %c0_11], %28 {strides = array<i32>} : memref<8x128xf32, #tpu.memory_space<vmem>>, vector<8x128xf32>,
    } else {
    }
    return
  }
  func.func @transform_0(%arg0: i32, %arg1: i32) -> (i32, i32) {
    %c1_i32 = arith.constant 1 : i32
    %0 = arith.subi %c1_i32, %arg0 : i32
    %1 = arith.muli %0, %arg1 : i32
    %c2_i32 = arith.constant 2 : i32
    %2 = arith.muli %arg0, %c2_i32 : i32
    %3 = arith.addi %1, %2 : i32
    %c0_i32 = arith.constant 0 : i32
    %c0_i32_0 = arith.constant 0 : i32
    return %3, %c0_i32 : i32, i32
  }
  func.func @transform_1(%arg0: i32, %arg1: i32) -> (i32, i32) {
    %c0_i32 = arith.constant 0 : i32
    %c0_i32_0 = arith.constant 0 : i32
    %c0_i32_1 = arith.constant 0 : i32
    return %c0_i32, %c0_i32_0 : i32, i32
  }
  func.func @transform_2(%arg0: i32, %arg1: i32) -> (i32, i32) {
    %c0_i32 = arith.constant 0 : i32
    %c0_i32_0 = arith.constant 0 : i32
    %c0_i32_1 = arith.constant 0 : i32
    return %c0_i32, %c0_i32_0 : i32, i32
  }
  func.func @transform_3(%arg0: i32, %arg1: i32) -> (i32, i32) {
    %0 = arith.muli %arg0, %arg1 : i32
    %c0_i32 = arith.constant 0 : i32
    %c0_i32_0 = arith.constant 0 : i32
    return %0, %c0_i32 : i32, i32
  }
}

</mosaic_0001>

<llo_original>
// kernel: tpu_custom_call.1
$region0: #{tpu_custom_call.1}
  #allocation0 [shape = 'u32[]', space=smem, size = 0x4, offset = 0x4, fixed_abs, tag = 'smem constant byte address 0x4 - core index']
  #allocation1 [shape = 'u32[144,128]{1,0:T(1,128)}', space=vmem, size = 0x12000, scoped, tag = 'internal scratch']
  #allocation2 [shape = 'f32[8,256]{1,0:T(8,128)}', space=vmem, size = 0x2000, scoped, tag = 'scratch operand']
  #allocation3 [shape = 'f32[24,256]{1,0:T(8,128)}', space=vmem, size = 0x6000, scoped, tag = 'scratch operand']
  %s0 = inlined_call_operand.hbm [shape: f32[20,2048], index: 0, kind: input, shape index: {}]
  %s1 = inlined_call_operand.hbm [shape: bf16[256,256], index: 1, kind: input, shape index: {}]
  %s2 = inlined_call_operand.hbm [shape: bf16[256,128], index: 2, kind: input, shape index: {}]
  %s3 = inlined_call_operand.hbm [shape: f32[20,128], index: 3, kind: output, shape index: {}]
  %s4 = sld [smem:[#allocation0]]
  $region73: #{tpu_custom_call.1} parent=0
    _
  %s6 = ssub.s32 1, %s4
  %s7 = scalar_select 0, %s6, %s4
  $region1: #{tpu_custom_call.1} parent=0
    #allocation4 [shape = 'u8[16384]{0}', space=vmem, size = 0x4000, scoped, tag = 'input window, operand 0']
    #allocation5 [shape = 's32[2]{0}', space=sflag, size = 0x8, scoped, tag = 'scoped memory for tpu_custom_call.1']
    #allocation6 [shape = 's32[2]{0}', space=sflag, size = 0x8, scoped, tag = 'scoped memory for tpu_custom_call.1']
    #allocation7 [shape = 'u8[131072]{0}', space=vmem, size = 0x20000, scoped, tag = 'input window, operand 1, single buffered']
    #allocation8 [shape = 's32[1]{0}', space=sflag, size = 0x4, scoped, tag = 'scoped memory for tpu_custom_call.1']
    #allocation9 [shape = 'u8[65536]{0}', space=vmem, size = 0x10000, scoped, tag = 'input window, operand 2, single buffered']
    #allocation10 [shape = 'u8[8192]{0}', space=vmem, size = 0x2000, scoped, tag = 'output window, operand 0']
    %8 = vsyncpa [#allocation5], 0
    %s9 = scalar_lea.sflag [#allocation5], 1
    %10 = vsyncpa %s9, 0
    %11 = vsyncpa [#allocation8], 0
    %12 = vsyncpa [#allocation6], 0
    %s13 = scalar_lea.sflag [#allocation6], 1
    %14 = vsyncpa %s13, 0
    loop: start=0, step=1, limit=8
    $region2: #{tpu_custom_call.1} parent=1 // loop_pre_header
      _
    $region3: #{tpu_custom_call.1} parent=1 // loop_header
      %s16 = sphi 0, %s20
      %p17 = scmp.ge.s32.totalorder %s16, 8
      %s23 = sphi 0, %s35
      %s24 = sphi 0, %s31
      %s25 = sphi 0, %s23
      %s26 = sphi 0, %s24
      %s27 = sphi 0, %s25
      %s28 = sphi 0, %s26
      %s46 = sphi 0, %s48
      %s49 = sphi 0, %s46
      %s50 = sphi 0, %s49
      %s66 = sphi 0, %s50
      %s70 = sphi 0, %s70
      %s72 = sphi 0, %s70
      %s73 = sphi 0, %s72
      %s87 = sphi 0, %s73
      %s91 = sphi 0, %s91
      %s93 = sphi 0, %s91
      %s94 = sphi 0, %s93
      %s108 = sphi 0, %s94
      %s116 = sphi 0, %s118
      %s119 = sphi 0, %s116
      %s120 = sphi 0, %s119
      %s136 = sphi 0, %s120
    $region4: #{tpu_custom_call.1} parent=1 // loop_header_branch
      %19 = sbr.rel (%p17) target = $region8
    $region5: #{tpu_custom_call.1} parent=1 // loop_body
      %s21 = ssub.s32 %s16, 1
      %s22 = ssub.s32 %s16, 2
      %s29 = sadd.s32 1, %s24
      %p30 = scmp.ge.s32.totalorder %s29, 3
      %s31 = scalar_select %p30, 0, %s29
      %s32 = sadd.s32 1, %s23
      %s33 = scalar_select %p30, %s32, %s23
      %p34 = scmp.ge.s32.totalorder %s33, 2
      %s35 = scalar_select %p34, 0, %s33
      %s36 = ssub.s32 1, %s23
      %s37 = smul.u32 %s36, %s24
      %s38 = smul.u32 %s23, 2
      %s39 = sadd.s32 %s37, %s38
      %s40 = ssub.s32 1, %s35
      %s41 = smul.u32 %s40, %s31
      %s42 = smul.u32 %s35, 2
      %s43 = sadd.s32 %s41, %s42
      %s44 = ssub.s32 %s39, %s43
      %p45 = scmp.eq.s32.totalorder %s44, 0
      %s47 = sadd.s32 %s46, 1
      %s48 = scalar_select %p45, %s46, %s47
      %p51 = pneg %p45
      %p52 = scmp.eq.s32.totalorder %s16, 5
      %p53 = por %p51, %p52
      %p54 = scmp.ne.s32.totalorder %s46, %s49
      %p55 = scmp.eq.s32.totalorder %s16, 0
      %p56 = por %p54, %p55
      %p57 = scmp.ne.s32.totalorder %s46, %s49
      %p58 = scmp.eq.s32.totalorder %s21, 5
      %p59 = por %p57, %p58
      %p60 = scmp.ne.s32.totalorder %s49, %s50
      %p61 = scmp.eq.s32.totalorder %s21, 0
      %p62 = por %p60, %p61
      %p63 = scmp.ne.s32.totalorder %s49, %s50
      %p64 = scmp.eq.s32.totalorder %s22, 5
      %p65 = por %p63, %p64
      %p67 = scmp.ne.s32.totalorder %s50, %s66
      %p68 = scmp.eq.s32.totalorder %s22, 0
      %p69 = por %p67, %p68
      %s71 = sadd.s32 %s70, 1
      %p74 = scmp.eq.s32.totalorder %s16, 5
      %p75 = scmp.ne.s32.totalorder %s70, %s72
      %p76 = scmp.eq.s32.totalorder %s16, 0
      %p77 = por %p75, %p76
      %p78 = scmp.ne.s32.totalorder %s70, %s72
      %p79 = scmp.eq.s32.totalorder %s21, 5
      %p80 = por %p78, %p79
      %p81 = scmp.ne.s32.totalorder %s72, %s73
      %p82 = scmp.eq.s32.totalorder %s21, 0
      %p83 = por %p81, %p82
      %p84 = scmp.ne.s32.totalorder %s72, %s73
      %p85 = scmp.eq.s32.totalorder %s22, 5
      %p86 = por %p84, %p85
      %p88 = scmp.ne.s32.totalorder %s73, %s87
      %p89 = scmp.eq.s32.totalorder %s22, 0
      %p90 = por %p88, %p89
      %s92 = sadd.s32 %s91, 1
      %p95 = scmp.eq.s32.totalorder %s16, 5
      %p96 = scmp.ne.s32.totalorder %s91, %s93
      %p97 = scmp.eq.s32.totalorder %s16, 0
      %p98 = por %p96, %p97
      %p99 = scmp.ne.s32.totalorder %s91, %s93
      %p100 = scmp.eq.s32.totalorder %s21, 5
      %p101 = por %p99, %p100
      %p102 = scmp.ne.s32.totalorder %s93, %s94
      %p103 = scmp.eq.s32.totalorder %s21, 0
      %p104 = por %p102, %p103
      %p105 = scmp.ne.s32.totalorder %s93, %s94
      %p106 = scmp.eq.s32.totalorder %s22, 5
      %p107 = por %p105, %p106
      %p109 = scmp.ne.s32.totalorder %s94, %s108
      %p110 = scmp.eq.s32.totalorder %s22, 0
      %p111 = por %p109, %p110
      %s112 = smul.u32 %s23, %s24
      %s113 = smul.u32 %s35, %s31
      %s114 = ssub.s32 %s112, %s113
      %p115 = scmp.eq.s32.totalorder %s114, 0
      %s117 = sadd.s32 %s116, 1
      %s118 = scalar_select %p115, %s116, %s117
      %p121 = pneg %p115
      %p122 = scmp.eq.s32.totalorder %s16, 5
      %p123 = por %p121, %p122
      %p124 = scmp.ne.s32.totalorder %s116, %s119
      %p125 = scmp.eq.s32.totalorder %s16, 0
      %p126 = por %p124, %p125
      %p127 = scmp.ne.s32.totalorder %s116, %s119
      %p128 = scmp.eq.s32.totalorder %s21, 5
      %p129 = por %p127, %p128
      %p130 = scmp.ne.s32.totalorder %s119, %s120
      %p131 = scmp.eq.s32.totalorder %s21, 0
      %p132 = por %p130, %p131
      %p133 = scmp.ne.s32.totalorder %s119, %s120
      %p134 = scmp.eq.s32.totalorder %s22, 5
      %p135 = por %p133, %p134
      %p137 = scmp.ne.s32.totalorder %s120, %s136
      %p138 = scmp.eq.s32.totalorder %s22, 0
      %p139 = por %p137, %p138
      %p140 = scmp.le.s32.totalorder 1, %s16
      %p141 = scmp.lt.s32.totalorder %s16, 7
      %p142 = pnand %p140, %p141
      %p143 = pneg %p142
      // Predicated region
      $region9: #{tpu_custom_call.1} parent=5 // pred_check
        _
      $region10: #{tpu_custom_call.1} parent=5 // pred_check_branch
        %145 = sbr.rel (%p142) target = $region12
      $region11: #{tpu_custom_call.1} parent=5 // pred_region
        %s146 = ssub.s32 %s16, 1
        // Predicated region
        $region13: #{tpu_custom_call.1} parent=11 // pred_check
          %p147 = pneg %p83
        $region14: #{tpu_custom_call.1} parent=11 // pred_check_branch
          %149 = sbr.rel (%p147) target = $region16
        $region15: #{tpu_custom_call.1} parent=11 // pred_region
          %s151 = ssub.s32 4096, 4096
          %152 = vsyncadd [#allocation8], %s151
          %s153 = sshll.u32 [#allocation7], 4
          %s154 = int_to_ptr.vmem [resolvable:$true] %s153
          %159 = dma.hbm_to_vmem [thread:$0]  %s1, 4096, %s154, [#allocation8], 128, 128, 8
        $region16: #{tpu_custom_call.1} parent=11 // pred_fallthru
          _
        // Predicated region
        $region17: #{tpu_custom_call.1} parent=11 // pred_check
          %p160 = pneg %p104
        $region18: #{tpu_custom_call.1} parent=11 // pred_check_branch
          %162 = sbr.rel (%p160) target = $region20
        $region19: #{tpu_custom_call.1} parent=11 // pred_region
          %s164 = ssub.s32 2048, 2048
          %165 = vsyncadd [#allocation8], %s164
          %s166 = sshll.u32 [#allocation9], 4
          %s167 = int_to_ptr.vmem [resolvable:$true] %s166
          %172 = dma.hbm_to_vmem [thread:$0]  %s2, 2048, %s167, [#allocation8], 64, 64, 4
        $region20: #{tpu_custom_call.1} parent=11 // pred_fallthru
          _
      $region12: #{tpu_custom_call.1} parent=5 // pred_fallthru
        _
      %p173 = scmp.lt.s32.totalorder %s16, 6
      // Predicated region
      $region21: #{tpu_custom_call.1} parent=5 // pred_check
        %p174 = pneg %p173
      $region22: #{tpu_custom_call.1} parent=5 // pred_check_branch
        %176 = sbr.rel (%p174) target = $region24
      $region23: #{tpu_custom_call.1} parent=5 // pred_region
        // Predicated region
        $region25: #{tpu_custom_call.1} parent=23 // pred_check
          %p177 = pneg %p56
        $region26: #{tpu_custom_call.1} parent=23 // pred_check_branch
          %179 = sbr.rel (%p177) target = $region28
        $region27: #{tpu_custom_call.1} parent=23 // pred_region
          %s180 = sand.u32 %s46, 1
          %s181 = scalar_lea.sflag [#allocation5], %s180
          %s182 = sand.u32 %s46, 1
          %s183 = smul.addr %s182, 16
          %s184 = scalar_lea.vmem [#allocation4], %s183
          %s185 = ssub.s32 1, %s23
          %s186 = smul.u32 %s185, %s24
          %s187 = smul.u32 %s23, 2
          %s188 = sadd.s32 %s186, %s187
          %s190 = ssub.s32 256, 256
          %191 = vsyncadd %s181, %s190
          %s192 = smul.addr %s188, 16
          %s193 = smul.addr %s192, 128
          %s194 = scalar_lea.hbm %s0, %s193
          %s196 = sshll.u32 %s184, 4
          %s197 = int_to_ptr.vmem [resolvable:$true] %s196
          %199 = dma.hbm_to_vmem [thread:$0]  %s194, 256, %s197, %s181
        $region28: #{tpu_custom_call.1} parent=23 // pred_fallthru
          _
      $region24: #{tpu_custom_call.1} parent=5 // pred_fallthru
        _
      %p200 = scmp.le.s32.totalorder 1, %s16
      %p201 = scmp.lt.s32.totalorder %s16, 7
      %p202 = pnand %p200, %p201
      %p203 = pneg %p202
      // Predicated region
      $region29: #{tpu_custom_call.1} parent=5 // pred_check
        _
      $region30: #{tpu_custom_call.1} parent=5 // pred_check_branch
        %205 = sbr.rel (%p202) target = $region32
      $region31: #{tpu_custom_call.1} parent=5 // pred_region
        %s206 = ssub.s32 %s16, 1
        %s207 = sand.u32 %s49, 1
        %s208 = scalar_lea.sflag [#allocation5], %s207
        %s209 = sand.u32 %s49, 1
        %s210 = smul.addr %s209, 16
        %s211 = scalar_lea.vmem [#allocation4], %s210
        // Predicated region
        $region33: #{tpu_custom_call.1} parent=31 // pred_check
          %p212 = pneg %p62
        $region34: #{tpu_custom_call.1} parent=31 // pred_check_branch
          %214 = sbr.rel (%p212) target = $region36
        $region35: #{tpu_custom_call.1} parent=31 // pred_region
          %215 = dma.done %s208, 256
        $region36: #{tpu_custom_call.1} parent=31 // pred_fallthru
          _
        // Predicated region
        $region37: #{tpu_custom_call.1} parent=31 // pred_check
          %p216 = pneg %p83
        $region38: #{tpu_custom_call.1} parent=31 // pred_check_branch
          %218 = sbr.rel (%p216) target = $region40
        $region39: #{tpu_custom_call.1} parent=31 // pred_region
          %219 = dma.done [#allocation8], 4096
        $region40: #{tpu_custom_call.1} parent=31 // pred_fallthru
          _
        // Predicated region
        $region41: #{tpu_custom_call.1} parent=31 // pred_check
          %p220 = pneg %p104
        $region42: #{tpu_custom_call.1} parent=31 // pred_check_branch
          %222 = sbr.rel (%p220) target = $region44
        $region43: #{tpu_custom_call.1} parent=31 // pred_region
          %223 = dma.done [#allocation8], 2048
        $region44: #{tpu_custom_call.1} parent=31 // pred_fallthru
          _
        %s224 = sand.u32 %s49, 1
        %s225 = scalar_lea.sflag [#allocation5], %s224
        %s226 = sand.u32 %s49, 1
        %s227 = smul.addr %s226, 16
        %s228 = scalar_lea.vmem [#allocation4], %s227
        %p229 = pneg %p62
        %p230 = pneg %p59
        %p231 = pneg %p83
        %p232 = pneg %p80
        %p233 = pneg %p104
        %p234 = pneg %p101
        %p235 = pneg %p132
        %p236 = pneg %p129
        %s237 = sand.u32 %s119, 1
        %s238 = scalar_lea.sflag [#allocation6], %s237
        %s239 = sand.u32 %s119, 1
        %s240 = smul.addr %s239, 8
        %s241 = scalar_lea.vmem [#allocation10], %s240
        %s242 = ssub.s32 1, %s25
        %s243 = smul.u32 %s242, %s26
        %s244 = smul.u32 %s25, 2
        %s245 = sadd.s32 %s243, %s244
        %s246 = smul.u32 %s25, %s26
        %p248 = scmp.eq.s32.totalorder %s25, 0
        // Predicated region
        $region45: #{tpu_custom_call.1} parent=31 // pred_check
          %p249 = pneg %p248
        $region46: #{tpu_custom_call.1} parent=31 // pred_check_branch
          %251 = sbr.rel (%p249) target = $region48
        $region47: #{tpu_custom_call.1} parent=31 // pred_region
          %p252 = scmp.eq.s32.totalorder %s26, 0
          // Predicated region
          $region49: #{tpu_custom_call.1} parent=47 // pred_check
            %p253 = pneg %p252
          $region50: #{tpu_custom_call.1} parent=47 // pred_check_branch
            %255 = sbr.rel (%p253) target = $region52
          $region51: #{tpu_custom_call.1} parent=47 // pred_region
            %256 = vst [vmem:[#allocation2] sm:$0xff] 0.0
            %257 = vst [vmem:[#allocation2 + $0x8] sm:$0xff] 0.0
          $region52: #{tpu_custom_call.1} parent=47 // pred_fallthru
            _
          %v258 = vld [vmem:[%s211] sm:$0xff]
          %v259 = vld [vmem:[%s211 + $0x8] sm:$0xff]
          %v260 = vpack.c.bf16 %v258, %v258
          %v261 = vpack.c.bf16 %v259, %v259
          %v262 = vld [vmem:[#allocation7] sm:$0xff]
          %v263 = vld [vmem:[#allocation7 + $0x8] sm:$0xff]
          %v264 = vld [vmem:[#allocation7 + $0x10] sm:$0xff]
          %v265 = vld [vmem:[#allocation7 + $0x18] sm:$0xff]
          %v266 = vld [vmem:[#allocation7 + $0x20] sm:$0xff]
          %v267 = vld [vmem:[#allocation7 + $0x28] sm:$0xff]
          %v268 = vld [vmem:[#allocation7 + $0x30] sm:$0xff]
          %v269 = vld [vmem:[#allocation7 + $0x38] sm:$0xff]
          %v270 = vld [vmem:[#allocation7 + $0x40] sm:$0xff]
          %v271 = vld [vmem:[#allocation7 + $0x48] sm:$0xff]
          %v272 = vld [vmem:[#allocation7 + $0x50] sm:$0xff]
          %v273 = vld [vmem:[#allocation7 + $0x58] sm:$0xff]
          %v274 = vld [vmem:[#allocation7 + $0x60] sm:$0xff]
          %v275 = vld [vmem:[#allocation7 + $0x68] sm:$0xff]
          %v276 = vld [vmem:[#allocation7 + $0x70] sm:$0xff]
          %v277 = vld [vmem:[#allocation7 + $0x78] sm:$0xff]
          %v278 = vld [vmem:[#allocation7 + $0x80] sm:$0xff]
          %v279 = vld [vmem:[#allocation7 + $0x88] sm:$0xff]
          %v280 = vld [vmem:[#allocation7 + $0x90] sm:$0xff]
          %v281 = vld [vmem:[#allocation7 + $0x98] sm:$0xff]
          %v282 = vld [vmem:[#allocation7 + $0xa0] sm:$0xff]
          %v283 = vld [vmem:[#allocation7 + $0xa8] sm:$0xff]
          %v284 = vld [vmem:[#allocation7 + $0xb0] sm:$0xff]
          %v285 = vld [vmem:[#allocation7 + $0xb8] sm:$0xff]
          %v286 = vld [vmem:[#allocation7 + $0xc0] sm:$0xff]
          %v287 = vld [vmem:[#allocation7 + $0xc8] sm:$0xff]
          %v288 = vld [vmem:[#allocation7 + $0xd0] sm:$0xff]
          %v289 = vld [vmem:[#allocation7 + $0xd8] sm:$0xff]
          %v290 = vld [vmem:[#allocation7 + $0xe0] sm:$0xff]
          %v291 = vld [vmem:[#allocation7 + $0xe8] sm:$0xff]
          %v292 = vld [vmem:[#allocation7 + $0xf0] sm:$0xff]
          %v293 = vld [vmem:[#allocation7 + $0xf8] sm:$0xff]
          %v326 = vunpack.c.l.b16 %v262
          %v327 = vunpack.c.h.b16 %v262
          %v328 = vunpack.c.l.b16 %v263
          %v329 = vunpack.c.h.b16 %v263
          %v330 = vunpack.c.l.b16 %v264
          %v331 = vunpack.c.h.b16 %v264
          %v332 = vunpack.c.l.b16 %v265
          %v333 = vunpack.c.h.b16 %v265
          %v334 = vunpack.c.l.b16 %v266
          %v335 = vunpack.c.h.b16 %v266
          %v336 = vunpack.c.l.b16 %v267
          %v337 = vunpack.c.h.b16 %v267
          %v338 = vunpack.c.l.b16 %v268
          %v339 = vunpack.c.h.b16 %v268
          %v340 = vunpack.c.l.b16 %v269
          %v341 = vunpack.c.h.b16 %v269
          %v342 = vunpack.c.l.b16 %v270
          %v343 = vunpack.c.h.b16 %v270
          %v344 = vunpack.c.l.b16 %v271
          %v345 = vunpack.c.h.b16 %v271
          %v346 = vunpack.c.l.b16 %v272
          %v347 = vunpack.c.h.b16 %v272
          %v348 = vunpack.c.l.b16 %v273
          %v349 = vunpack.c.h.b16 %v273
          %v350 = vunpack.c.l.b16 %v274
          %v351 = vunpack.c.h.b16 %v274
          %v352 = vunpack.c.l.b16 %v275
          %v353 = vunpack.c.h.b16 %v275
          %v354 = vunpack.c.l.b16 %v276
          %v355 = vunpack.c.h.b16 %v276
          %v356 = vunpack.c.l.b16 %v277
          %v357 = vunpack.c.h.b16 %v277
          %v358 = vunpack.c.l.b16 %v278
          %v359 = vunpack.c.h.b16 %v278
          %v360 = vunpack.c.l.b16 %v279
          %v361 = vunpack.c.h.b16 %v279
          %v362 = vunpack.c.l.b16 %v280
          %v363 = vunpack.c.h.b16 %v280
          %v364 = vunpack.c.l.b16 %v281
          %v365 = vunpack.c.h.b16 %v281
          %v366 = vunpack.c.l.b16 %v282
          %v367 = vunpack.c.h.b16 %v282
          %v368 = vunpack.c.l.b16 %v283
          %v369 = vunpack.c.h.b16 %v283
          %v370 = vunpack.c.l.b16 %v284
          %v371 = vunpack.c.h.b16 %v284
          %v372 = vunpack.c.l.b16 %v285
          %v373 = vunpack.c.h.b16 %v285
          %v374 = vunpack.c.l.b16 %v286
          %v375 = vunpack.c.h.b16 %v286
          %v376 = vunpack.c.l.b16 %v287
          %v377 = vunpack.c.h.b16 %v287
          %v378 = vunpack.c.l.b16 %v288
          %v379 = vunpack.c.h.b16 %v288
          %v380 = vunpack.c.l.b16 %v289
          %v381 = vunpack.c.h.b16 %v289
          %v382 = vunpack.c.l.b16 %v290
          %v383 = vunpack.c.h.b16 %v290
          %v384 = vunpack.c.l.b16 %v291
          %v385 = vunpack.c.h.b16 %v291
          %v386 = vunpack.c.l.b16 %v292
          %v387 = vunpack.c.h.b16 %v292
          %v388 = vunpack.c.l.b16 %v293
          %v389 = vunpack.c.h.b16 %v293
          %v390 = vpack.c.b16 %v328, %v326
          %v391 = vpack.c.b16 %v329, %v327
          %v392 = vpack.c.b16 %v332, %v330
          %v393 = vpack.c.b16 %v333, %v331
          %v394 = vpack.c.b16 %v336, %v334
          %v395 = vpack.c.b16 %v337, %v335
          %v396 = vpack.c.b16 %v340, %v338
          %v397 = vpack.c.b16 %v341, %v339
          %v398 = vpack.c.b16 %v344, %v342
          %v399 = vpack.c.b16 %v345, %v343
          %v400 = vpack.c.b16 %v348, %v346
          %v401 = vpack.c.b16 %v349, %v347
          %v402 = vpack.c.b16 %v352, %v350
          %v403 = vpack.c.b16 %v353, %v351
          %v404 = vpack.c.b16 %v356, %v354
          %v405 = vpack.c.b16 %v357, %v355
          %v406 = vpack.c.b16 %v360, %v358
          %v407 = vpack.c.b16 %v361, %v359
          %v408 = vpack.c.b16 %v364, %v362
          %v409 = vpack.c.b16 %v365, %v363
          %v410 = vpack.c.b16 %v368, %v366
          %v411 = vpack.c.b16 %v369, %v367
          %v412 = vpack.c.b16 %v372, %v370
          %v413 = vpack.c.b16 %v373, %v371
          %v414 = vpack.c.b16 %v376, %v374
          %v415 = vpack.c.b16 %v377, %v375
          %v416 = vpack.c.b16 %v380, %v378
          %v417 = vpack.c.b16 %v381, %v379
          %v418 = vpack.c.b16 %v384, %v382
          %v419 = vpack.c.b16 %v385, %v383
          %v420 = vpack.c.b16 %v388, %v386
          %v421 = vpack.c.b16 %v389, %v387
          %454 = vmatprep.subr.bf16.mxu0 %v405
          %455 = vmatpush1.bf16.msra.mxu0 %v404
          %456 = vmatprep.subr.bf16.mxu0 %v403
          %457 = vmatpush1.bf16.msra.mxu0 %v402
          %458 = vmatprep.subr.bf16.mxu0 %v401
          %459 = vmatpush1.bf16.msra.mxu0 %v400
          %460 = vmatprep.subr.bf16.mxu0 %v399
          %461 = vmatpush1.bf16.msra.mxu0 %v398
          %462 = vmatprep.subr.bf16.mxu0 %v397
          %463 = vmatpush1.bf16.msra.mxu0 %v396
          %464 = vmatprep.subr.bf16.mxu0 %v395
          %465 = vmatpush1.bf16.msra.mxu0 %v394
          %466 = vmatprep.subr.bf16.mxu0 %v393
          %467 = vmatpush1.bf16.msra.mxu0 %v392
          %468 = vmatprep.subr.bf16.mxu0 %v391
          %469 = vmatpush1.bf16.msra.mxu0 %v390
          %470 = vmatprep.subr.bf16.mxu0 %v421
          %471 = vmatpush2.bf16.msra.mxu0 %v420
          %472 = vmatprep.subr.bf16.mxu0 %v419
          %473 = vmatpush2.bf16.msra.mxu0 %v418
          %474 = vmatprep.subr.bf16.mxu0 %v417
          %475 = vmatpush2.bf16.msra.mxu0 %v416
          %476 = vmatprep.subr.bf16.mxu0 %v415
          %477 = vmatpush2.bf16.msra.mxu0 %v414
          %478 = vmatprep.subr.bf16.mxu0 %v413
          %479 = vmatpush2.bf16.msra.mxu0 %v412
          %480 = vmatprep.subr.bf16.mxu0 %v411
          %481 = vmatpush2.bf16.msra.mxu0 %v410
          %482 = vmatprep.subr.bf16.mxu0 %v409
          %483 = vmatpush2.bf16.msra.mxu0 %v408
          %484 = vmatprep.subr.bf16.mxu0 %v407
          %485 = vmatpush2.bf16.msra.mxu0 %v406
          %486 = vmatprep.mubr.bf16.mxu0 %v261
          %487 = vmatmul.mubr.bf16.gmra.mxu0 %v260
          %v488 = vpop.f32.mrf.mxu0
          %v489 = vadd.f32 0.0, %v488
          %v490 = vpop.f32.mrf.mxu0
          %v491 = vadd.f32 0.0, %v490
          %v492 = vpop.f32.mrf.mxu0
          %v493 = vpop.f32.mrf.mxu0
          %494 = vdwg.mxu0
          %s495 = smul.u32 %s26, 8
          %s496 = sshra.s32 %s495, 3
          %s497 = sand.u32 %s495, 7
          %s498 = smul.u32 %s496, 2
          %s499 = smul.addr %s498, 8
          %s500 = scalar_lea.vmem [#allocation3], %s499
          %501 = vst [vmem:[%s500] sm:$0xff] %v489
          %502 = vst [vmem:[%s500 + $0x8] sm:$0xff] %v491
          %v503 = vlaneseq
          %v504 = vshrl.u32 %v503, 7
          %v505 = vstv %s495
          %v506 = vadd.s32 %v505, %v504
          %vm507 = vcmp.lt.s32.totalorder %v506, 20
          %v508 = vsel %vm507, 1, 0
          %vm509 = vcmp.eq.s32.totalorder %v508, 1
          %v510 = vsel %vm509, %v489, 0.0
          %v511 = vsel %vm509, %v491, 0.0
          %v512 = vrot.slane %v510, 4
          %v513 = vadd.f32 %v510, %v512
          %v514 = vrot.slane %v513, 2
          %v515 = vadd.f32 %v513, %v514
          %v516 = vrot.slane %v515, 1
          %v517 = vadd.f32 %v515, %v516
          %v518 = vrot.slane %v511, 4
          %v519 = vadd.f32 %v511, %v518
          %v520 = vrot.slane %v519, 2
          %v521 = vadd.f32 %v519, %v520
          %v522 = vrot.slane %v521, 1
          %v523 = vadd.f32 %v521, %v522
          %v524 = vmul.f32 %v510, %v510
          %v525 = vmul.f32 %v511, %v511
          %v526 = vrot.slane %v524, 4
          %v527 = vadd.f32 %v524, %v526
          %v528 = vrot.slane %v527, 2
          %v529 = vadd.f32 %v527, %v528
          %v530 = vrot.slane %v529, 1
          %v531 = vadd.f32 %v529, %v530
          %v532 = vrot.slane %v525, 4
          %v533 = vadd.f32 %v525, %v532
          %v534 = vrot.slane %v533, 2
          %v535 = vadd.f32 %v533, %v534
          %v536 = vrot.slane %v535, 1
          %v537 = vadd.f32 %v535, %v536
          %vm538 = vcmask 1040384
          %v539 = vsel %vm538, %v517, %v531
          %v540 = vsel %vm538, %v523, %v537
          %v541 = vld [vmem:[#allocation2] sm:$0x3]
          %v542 = vld [vmem:[#allocation2 + $0x8] sm:$0x3]
          %v543 = vadd.f32 %v541, %v539
          %v544 = vadd.f32 %v542, %v540
          %545 = vst [vmem:[#allocation2] sm:$0x3] %v543
          %546 = vst [vmem:[#allocation2 + $0x8] sm:$0x3] %v544
          %p547 = scmp.eq.s32.totalorder %s26, 2
          // Predicated region
          $region53: #{tpu_custom_call.1} parent=47 // pred_check
            %p548 = pneg %p547
          $region54: #{tpu_custom_call.1} parent=47 // pred_check_branch
            %550 = sbr.rel (%p548) target = $region56
          $region55: #{tpu_custom_call.1} parent=47 // pred_region
            %v551 = vld [vmem:[#allocation2] ss:$8 sm:$0x3]
            %v552 = vmul.f32 %v551, 0.05
            %s553 = scalar_lea.vmem [#allocation2], 1
            %v554 = vld [vmem:[%s553] ss:$8 sm:$0x3]
            %v555 = vmul.f32 %v554, 0.05
            %v556 = vmul.f32 %v552, %v552
            %v557 = vsub.f32 %v555, %v556
            %v558 = vlaneseq
            %vm559 = vcmp.ge.s32.totalorder %v558, 0
            %vm560 = vcmp.lt.s32.totalorder %v558, 256
            %vm561 = vmand %vm559, %vm560
            %562 = vst.msk [vmem:[#allocation2] ss:$8 sm:$0x3] %vm561, %v552
            %563 = vst.msk [vmem:[#allocation2] ss:$8 sm:$0x0] %vm561, %v552
            %v564 = vmax.f32 %v557, 0.0
            %v565 = vadd.f32 %v564, 1e-05
            %v566 = vrsqrt.pop %v565
            %567 = vst.msk [vmem:[%s553] ss:$8 sm:$0x3] %vm561, %v566
            %568 = vst.msk [vmem:[%s553] ss:$8 sm:$0x0] %vm561, %v566
          $region56: #{tpu_custom_call.1} parent=47 // pred_fallthru
            _
        $region48: #{tpu_custom_call.1} parent=31 // pred_fallthru
          _
        %p569 = scmp.eq.s32.totalorder %s25, 1
        // Predicated region
        $region57: #{tpu_custom_call.1} parent=31 // pred_check
          %p570 = pneg %p569
        $region58: #{tpu_custom_call.1} parent=31 // pred_check_branch
          %572 = sbr.rel (%p570) target = $region60
        $region59: #{tpu_custom_call.1} parent=31 // pred_region
          %s573 = smul.u32 %s26, 8
          %s574 = sshra.s32 %s573, 3
          %s575 = sand.u32 %s573, 7
          %s576 = smul.u32 %s574, 2
          %s577 = smul.addr %s576, 8
          %s578 = scalar_lea.vmem [#allocation3], %s577
          %v579 = vld [vmem:[%s578] sm:$0xff]
          %v580 = vld [vmem:[%s578 + $0x8] sm:$0xff]
          %v581 = vld [vmem:[#allocation2] ss:$8 sm:$0x3]
          %v583 = vlaneseq
          %v584 = vshrl.u32 %v583, 7
          %v585 = vsub.s32 0, %v584
          %v586 = vrot.slane %v581, %v585
          %v587 = vlaneseq
          %v588 = vshrl.u32 %v587, 7
          %v589 = vsub.s32 1, %v588
          %v590 = vrot.slane %v581, %v589
          %v593 = vsub.f32 %v579, %v586
          %v594 = vsub.f32 %v580, %v590
          %s595 = scalar_lea.vmem [#allocation2], 1
          %v596 = vld [vmem:[%s595] ss:$8 sm:$0x3]
          %v598 = vlaneseq
          %v599 = vshrl.u32 %v598, 7
          %v600 = vsub.s32 0, %v599
          %v601 = vrot.slane %v596, %v600
          %v602 = vlaneseq
          %v603 = vshrl.u32 %v602, 7
          %v604 = vsub.s32 1, %v603
          %v605 = vrot.slane %v596, %v604
          %v608 = vmul.f32 %v593, %v601
          %v609 = vmul.f32 %v594, %v605
          %v610 = vmax.f32 %v608, 0.0
          %v611 = vmax.f32 %v609, 0.0
          %v612 = vpack.c.bf16 %v610, %v610
          %v613 = vpack.c.bf16 %v611, %v611
          %v614 = vld [vmem:[#allocation9] sm:$0xf]
          %v615 = vld [vmem:[#allocation9 + $0x4] sm:$0xf]
          %v616 = vld [vmem:[#allocation9 + $0x8] sm:$0xf]
          %v617 = vld [vmem:[#allocation9 + $0xc] sm:$0xf]
          %v618 = vld [vmem:[#allocation9 + $0x10] sm:$0xf]
          %v619 = vld [vmem:[#allocation9 + $0x14] sm:$0xf]
          %v620 = vld [vmem:[#allocation9 + $0x18] sm:$0xf]
          %v621 = vld [vmem:[#allocation9 + $0x1c] sm:$0xf]
          %v622 = vld [vmem:[#allocation9 + $0x20] sm:$0xf]
          %v623 = vld [vmem:[#allocation9 + $0x24] sm:$0xf]
          %v624 = vld [vmem:[#allocation9 + $0x28] sm:$0xf]
          %v625 = vld [vmem:[#allocation9 + $0x2c] sm:$0xf]
          %v626 = vld [vmem:[#allocation9 + $0x30] sm:$0xf]
          %v627 = vld [vmem:[#allocation9 + $0x34] sm:$0xf]
          %v628 = vld [vmem:[#allocation9 + $0x38] sm:$0xf]
          %v629 = vld [vmem:[#allocation9 + $0x3c] sm:$0xf]
          %v630 = vld [vmem:[#allocation9 + $0x40] sm:$0xf]
          %v631 = vld [vmem:[#allocation9 + $0x44] sm:$0xf]
          %v632 = vld [vmem:[#allocation9 + $0x48] sm:$0xf]
          %v633 = vld [vmem:[#allocation9 + $0x4c] sm:$0xf]
          %v634 = vld [vmem:[#allocation9 + $0x50] sm:$0xf]
          %v635 = vld [vmem:[#allocation9 + $0x54] sm:$0xf]
          %v636 = vld [vmem:[#allocation9 + $0x58] sm:$0xf]
          %v637 = vld [vmem:[#allocation9 + $0x5c] sm:$0xf]
          %v638 = vld [vmem:[#allocation9 + $0x60] sm:$0xf]
          %v639 = vld [vmem:[#allocation9 + $0x64] sm:$0xf]
          %v640 = vld [vmem:[#allocation9 + $0x68] sm:$0xf]
          %v641 = vld [vmem:[#allocation9 + $0x6c] sm:$0xf]
          %v642 = vld [vmem:[#allocation9 + $0x70] sm:$0xf]
          %v643 = vld [vmem:[#allocation9 + $0x74] sm:$0xf]
          %v644 = vld [vmem:[#allocation9 + $0x78] sm:$0xf]
          %v645 = vld [vmem:[#allocation9 + $0x7c] sm:$0xf]
          %v678 = vunpack.c.l.b16 %v614
          %v679 = vunpack.c.l.b16 %v615
          %v680 = vunpack.c.l.b16 %v616
          %v681 = vunpack.c.l.b16 %v617
          %v682 = vunpack.c.l.b16 %v618
          %v683 = vunpack.c.l.b16 %v619
          %v684 = vunpack.c.l.b16 %v620
          %v685 = vunpack.c.l.b16 %v621
          %v686 = vunpack.c.l.b16 %v622
          %v687 = vunpack.c.l.b16 %v623
          %v688 = vunpack.c.l.b16 %v624
          %v689 = vunpack.c.l.b16 %v625
          %v690 = vunpack.c.l.b16 %v626
          %v691 = vunpack.c.l.b16 %v627
          %v692 = vunpack.c.l.b16 %v628
          %v693 = vunpack.c.l.b16 %v629
          %v694 = vunpack.c.l.b16 %v630
          %v695 = vunpack.c.l.b16 %v631
          %v696 = vunpack.c.l.b16 %v632
          %v697 = vunpack.c.l.b16 %v633
          %v698 = vunpack.c.l.b16 %v634
          %v699 = vunpack.c.l.b16 %v635
          %v700 = vunpack.c.l.b16 %v636
          %v701 = vunpack.c.l.b16 %v637
          %v702 = vunpack.c.l.b16 %v638
          %v703 = vunpack.c.l.b16 %v639
          %v704 = vunpack.c.l.b16 %v640
          %v705 = vunpack.c.l.b16 %v641
          %v706 = vunpack.c.l.b16 %v642
          %v707 = vunpack.c.l.b16 %v643
          %v708 = vunpack.c.l.b16 %v644
          %v709 = vunpack.c.l.b16 %v645
          %v710 = vpack.c.b16 %v679, %v678
          %v711 = vpack.c.b16 %v681, %v680
          %v712 = vpack.c.b16 %v683, %v682
          %v713 = vpack.c.b16 %v685, %v684
          %v714 = vpack.c.b16 %v687, %v686
          %v715 = vpack.c.b16 %v689, %v688
          %v716 = vpack.c.b16 %v691, %v690
          %v717 = vpack.c.b16 %v693, %v692
          %v718 = vpack.c.b16 %v695, %v694
          %v719 = vpack.c.b16 %v697, %v696
          %v720 = vpack.c.b16 %v699, %v698
          %v721 = vpack.c.b16 %v701, %v700
          %v722 = vpack.c.b16 %v703, %v702
          %v723 = vpack.c.b16 %v705, %v704
          %v724 = vpack.c.b16 %v707, %v706
          %v725 = vpack.c.b16 %v709, %v708
          %742 = vmatprep.subr.bf16.mxu0 0
          %743 = vmatpush1.bf16.msra.mxu0 %v717
          %744 = vmatprep.subr.bf16.mxu0 0
          %745 = vmatpush1.bf16.msra.mxu0 %v716
          %746 = vmatprep.subr.bf16.mxu0 0
          %747 = vmatpush1.bf16.msra.mxu0 %v715
          %748 = vmatprep.subr.bf16.mxu0 0
          %749 = vmatpush1.bf16.msra.mxu0 %v714
          %750 = vmatprep.subr.bf16.mxu0 0
          %751 = vmatpush1.bf16.msra.mxu0 %v713
          %752 = vmatprep.subr.bf16.mxu0 0
          %753 = vmatpush1.bf16.msra.mxu0 %v712
          %754 = vmatprep.subr.bf16.mxu0 0
          %755 = vmatpush1.bf16.msra.mxu0 %v711
          %756 = vmatprep.subr.bf16.mxu0 0
          %757 = vmatpush1.bf16.msra.mxu0 %v710
          %758 = vmatprep.subr.bf16.mxu0 0
          %759 = vmatpush2.bf16.msra.mxu0 %v725
          %760 = vmatprep.subr.bf16.mxu0 0
          %761 = vmatpush2.bf16.msra.mxu0 %v724
          %762 = vmatprep.subr.bf16.mxu0 0
          %763 = vmatpush2.bf16.msra.mxu0 %v723
          %764 = vmatprep.subr.bf16.mxu0 0
          %765 = vmatpush2.bf16.msra.mxu0 %v722
          %766 = vmatprep.subr.bf16.mxu0 0
          %767 = vmatpush2.bf16.msra.mxu0 %v721
          %768 = vmatprep.subr.bf16.mxu0 0
          %769 = vmatpush2.bf16.msra.mxu0 %v720
          %770 = vmatprep.subr.bf16.mxu0 0
          %771 = vmatpush2.bf16.msra.mxu0 %v719
          %772 = vmatprep.subr.bf16.mxu0 0
          %773 = vmatpush2.bf16.msra.mxu0 %v718
          %774 = vmatprep.mubr.bf16.mxu0 %v613
          %775 = vmatmul.mubr.bf16.gmra.mxu0 %v612
          %v776 = vpop.f32.mrf.mxu0
          %v777 = vadd.f32 0.0, %v776
          %v778 = vpop.f32.mrf.mxu0
          %v779 = vpop.f32.mrf.mxu0
          %v780 = vpop.f32.mrf.mxu0
          %781 = vdwg.mxu0
          %v782 = vmul.f32 %v777, %v777
          %783 = vadd.xlane.f32.xlu0 %v782
          %v784 = vpop.xlane.xlu0 %783
          %v785 = vmax.f32 %v784, 1e-24
          %v786 = vrsqrt.pop %v785
          %v787 = vmul.f32 %v777, %v786
          %788 = vst [vmem:[%s241] sm:$0xff] %v787
        $region60: #{tpu_custom_call.1} parent=31 // pred_fallthru
          _
        %s789 = sand.u32 %s119, 1
        %s790 = scalar_lea.sflag [#allocation6], %s789
        %s791 = sand.u32 %s119, 1
        %s792 = smul.addr %s791, 8
        %s793 = scalar_lea.vmem [#allocation10], %s792
        // Predicated region
        $region61: #{tpu_custom_call.1} parent=31 // pred_check
          %p794 = pneg %p129
        $region62: #{tpu_custom_call.1} parent=31 // pred_check_branch
          %796 = sbr.rel (%p794) target = $region64
        $region63: #{tpu_custom_call.1} parent=31 // pred_region
          %s797 = smul.u32 %s25, %s26
          %s799 = ssub.s32 128, 128
          %800 = vsyncadd %s790, %s799
          %s801 = smul.addr %s797, 128
          %s802 = scalar_lea.hbm %s3, %s801
          %s804 = sshll.u32 %s793, 4
          %s805 = int_to_ptr.vmem [resolvable:$true] %s804
          %807 = dma.vmem_to_hbm [thread:$0]  %s805, 128, %s802, %s790
        $region64: #{tpu_custom_call.1} parent=31 // pred_fallthru
          _
      $region32: #{tpu_custom_call.1} parent=5 // pred_fallthru
        _
      %p808 = scmp.le.s32.totalorder 2, %s16
      // Predicated region
      $region65: #{tpu_custom_call.1} parent=5 // pred_check
        %p809 = pneg %p808
      $region66: #{tpu_custom_call.1} parent=5 // pred_check_branch
        %811 = sbr.rel (%p809) target = $region68
      $region67: #{tpu_custom_call.1} parent=5 // pred_region
        %s812 = ssub.s32 %s16, 2
        // Predicated region
        $region69: #{tpu_custom_call.1} parent=67 // pred_check
          %p813 = pneg %p135
        $region70: #{tpu_custom_call.1} parent=67 // pred_check_branch
          %815 = sbr.rel (%p813) target = $region72
        $region71: #{tpu_custom_call.1} parent=67 // pred_region
          %s816 = sand.u32 %s120, 1
          %s817 = scalar_lea.sflag [#allocation6], %s816
          %s818 = sand.u32 %s120, 1
          %s819 = smul.addr %s818, 8
          %s820 = scalar_lea.vmem [#allocation10], %s819
          %821 = dma.done %s817, 128
        $region72: #{tpu_custom_call.1} parent=67 // pred_fallthru
          _
      $region68: #{tpu_custom_call.1} parent=5 // pred_fallthru
        _
    $region6: #{tpu_custom_call.1} parent=1 // loop_footer
      %s20 = sadd.s32 1, %s16
    $region7: #{tpu_custom_call.1} parent=1 // loop_footer_branch
      %15 = sbr.rel target = $region3
    $region8: #{tpu_custom_call.1} parent=1 // loop_exit
      _
    %822 = vsyncpa [#allocation5], 1
    %s823 = scalar_lea.sflag [#allocation5], 1
    %824 = vsyncpa %s823, 1
    %825 = vsyncpa [#allocation8], 1
    %826 = vsyncpa [#allocation6], 1
    %s827 = scalar_lea.sflag [#allocation6], 1
    %828 = vsyncpa %s827, 1

// kernel: tpu_custom_call.1
$region0: #{tpu_custom_call.1}
  #allocation0 [shape = 'u32[]', space=smem, size = 0x4, offset = 0x4, fixed_abs, tag = 'smem constant byte address 0x4 - core index']
  #allocation1 [shape = 'u32[144,128]{1,0:T(1,128)}', space=vmem, size = 0x12000, scoped, tag = 'internal scratch']
  #allocation2 [shape = 'f32[8,256]{1,0:T(8,128)}', space=vmem, size = 0x2000, scoped, tag = 'scratch operand']
  #allocation3 [shape = 'f32[24,256]{1,0:T(8,128)}', space=vmem, size = 0x6000, scoped, tag = 'scratch operand']
  %s0 = inlined_call_operand.hbm [shape: f32[20,2048], index: 0, kind: input, shape index: {}]
  %s1 = inlined_call_operand.hbm [shape: bf16[256,256], index: 1, kind: input, shape index: {}]
  %s2 = inlined_call_operand.hbm [shape: bf16[256,128], index: 2, kind: input, shape index: {}]
  %s3 = inlined_call_operand.hbm [shape: f32[20,128], index: 3, kind: output, shape index: {}]
  %s4 = sld [smem:[#allocation0]]
  $region73: #{tpu_custom_call.1} parent=0
    _
  %s6 = ssub.s32 1, %s4
  %s7 = scalar_select 0, %s6, %s4
  $region1: #{tpu_custom_call.1} parent=0
    #allocation4 [shape = 'u8[16384]{0}', space=vmem, size = 0x4000, scoped, tag = 'input window, operand 0']
    #allocation5 [shape = 's32[2]{0}', space=sflag, size = 0x8, scoped, tag = 'scoped memory for tpu_custom_call.1']
    #allocation6 [shape = 's32[2]{0}', space=sflag, size = 0x8, scoped, tag = 'scoped memory for tpu_custom_call.1']
    #allocation7 [shape = 'u8[131072]{0}', space=vmem, size = 0x20000, scoped, tag = 'input window, operand 1, single buffered']
    #allocation8 [shape = 's32[1]{0}', space=sflag, size = 0x4, scoped, tag = 'scoped memory for tpu_custom_call.1']
    #allocation9 [shape = 'u8[65536]{0}', space=vmem, size = 0x10000, scoped, tag = 'input window, operand 2, single buffered']
    #allocation10 [shape = 'u8[8192]{0}', space=vmem, size = 0x2000, scoped, tag = 'output window, operand 0']
    %8 = vsyncpa [#allocation5], 0
    %s9 = scalar_lea.sflag [#allocation5], 1
    %10 = vsyncpa %s9, 0
    %11 = vsyncpa [#allocation8], 0
    %12 = vsyncpa [#allocation6], 0
    %s13 = scalar_lea.sflag [#allocation6], 1
    %14 = vsyncpa %s13, 0
    loop: start=0, step=1, limit=8
    $region2: #{tpu_custom_call.1} parent=1 // loop_pre_header
      _
    $region3: #{tpu_custom_call.1} parent=1 // loop_header
      %s16 = sphi 0, %s20
      %p17 = scmp.ge.s32.totalorder %s16, 8
      %s23 = sphi 0, %s35
      %s24 = sphi 0, %s31
      %s25 = sphi 0, %s23
      %s26 = sphi 0, %s24
      %s27 = sphi 0, %s25
      %s28 = sphi 0, %s26
      %s46 = sphi 0, %s48
      %s49 = sphi 0, %s46
      %s50 = sphi 0, %s49
      %s66 = sphi 0, %s50
      %s70 = sphi 0, %s70
      %s72 = sphi 0, %s70
      %s73 = sphi 0, %s72
      %s87 = sphi 0, %s73
      %s91 = sphi 0, %s91
      %s93 = sphi 0, %s91
      %s94 = sphi 0, %s93
      %s108 = sphi 0, %s94
      %s116 = sphi 0, %s118
      %s119 = sphi 0, %s116
      %s120 = sphi 0, %s119
      %s136 = sphi 0, %s120
    $region4: #{tpu_custom_call.1} parent=1 // loop_header_branch
      %19 = sbr.rel (%p17) target = $region8
    $region5: #{tpu_custom_call.1} parent=1 // loop_body
      %s21 = ssub.s32 %s16, 1
      %s22 = ssub.s32 %s16, 2
      %s29 = sadd.s32 1, %s24
      %p30 = scmp.ge.s32.totalorder %s29, 3
      %s31 = scalar_select %p30, 0, %s29
      %s32 = sadd.s32 1, %s23
      %s33 = scalar_select %p30, %s32, %s23
      %p34 = scmp.ge.s32.totalorder %s33, 2
      %s35 = scalar_select %p34, 0, %s33
      %s36 = ssub.s32 1, %s23
      %s37 = smul.u32 %s36, %s24
      %s38 = smul.u32 %s23, 2
      %s39 = sadd.s32 %s37, %s38
      %s40 = ssub.s32 1, %s35
      %s41 = smul.u32 %s40, %s31
      %s42 = smul.u32 %s35, 2
      %s43 = sadd.s32 %s41, %s42
      %s44 = ssub.s32 %s39, %s43
      %p45 = scmp.eq.s32.totalorder %s44, 0
      %s47 = sadd.s32 %s46, 1
      %s48 = scalar_select %p45, %s46, %s47
      %p51 = pneg %p45
      %p52 = scmp.eq.s32.totalorder %s16, 5
      %p53 = por %p51, %p52
      %p54 = scmp.ne.s32.totalorder %s46, %s49
      %p55 = scmp.eq.s32.totalorder %s16, 0
      %p56 = por %p54, %p55
      %p57 = scmp.ne.s32.totalorder %s46, %s49
      %p58 = scmp.eq.s32.totalorder %s21, 5
      %p59 = por %p57, %p58
      %p60 = scmp.ne.s32.totalorder %s49, %s50
      %p61 = scmp.eq.s32.totalorder %s21, 0
      %p62 = por %p60, %p61
      %p63 = scmp.ne.s32.totalorder %s49, %s50
      %p64 = scmp.eq.s32.totalorder %s22, 5
      %p65 = por %p63, %p64
      %p67 = scmp.ne.s32.totalorder %s50, %s66
      %p68 = scmp.eq.s32.totalorder %s22, 0
      %p69 = por %p67, %p68
      %s71 = sadd.s32 %s70, 1
      %p74 = scmp.eq.s32.totalorder %s16, 5
      %p75 = scmp.ne.s32.totalorder %s70, %s72
      %p76 = scmp.eq.s32.totalorder %s16, 0
      %p77 = por %p75, %p76
      %p78 = scmp.ne.s32.totalorder %s70, %s72
      %p79 = scmp.eq.s32.totalorder %s21, 5
      %p80 = por %p78, %p79
      %p81 = scmp.ne.s32.totalorder %s72, %s73
      %p82 = scmp.eq.s32.totalorder %s21, 0
      %p83 = por %p81, %p82
      %p84 = scmp.ne.s32.totalorder %s72, %s73
      %p85 = scmp.eq.s32.totalorder %s22, 5
      %p86 = por %p84, %p85
      %p88 = scmp.ne.s32.totalorder %s73, %s87
      %p89 = scmp.eq.s32.totalorder %s22, 0
      %p90 = por %p88, %p89
      %s92 = sadd.s32 %s91, 1
      %p95 = scmp.eq.s32.totalorder %s16, 5
      %p96 = scmp.ne.s32.totalorder %s91, %s93
      %p97 = scmp.eq.s32.totalorder %s16, 0
      %p98 = por %p96, %p97
      %p99 = scmp.ne.s32.totalorder %s91, %s93
      %p100 = scmp.eq.s32.totalorder %s21, 5
      %p101 = por %p99, %p100
      %p102 = scmp.ne.s32.totalorder %s93, %s94
      %p103 = scmp.eq.s32.totalorder %s21, 0
      %p104 = por %p102, %p103
      %p105 = scmp.ne.s32.totalorder %s93, %s94
      %p106 = scmp.eq.s32.totalorder %s22, 5
      %p107 = por %p105, %p106
      %p109 = scmp.ne.s32.totalorder %s94, %s108
      %p110 = scmp.eq.s32.totalorder %s22, 0
      %p111 = por %p109, %p110
      %s112 = smul.u32 %s23, %s24
      %s113 = smul.u32 %s35, %s31
      %s114 = ssub.s32 %s112, %s113
      %p115 = scmp.eq.s32.totalorder %s114, 0
      %s117 = sadd.s32 %s116, 1
      %s118 = scalar_select %p115, %s116, %s117
      %p121 = pneg %p115
      %p122 = scmp.eq.s32.totalorder %s16, 5
      %p123 = por %p121, %p122
      %p124 = scmp.ne.s32.totalorder %s116, %s119
      %p125 = scmp.eq.s32.totalorder %s16, 0
      %p126 = por %p124, %p125
      %p127 = scmp.ne.s32.totalorder %s116, %s119
      %p128 = scmp.eq.s32.totalorder %s21, 5
      %p129 = por %p127, %p128
      %p130 = scmp.ne.s32.totalorder %s119, %s120
      %p131 = scmp.eq.s32.totalorder %s21, 0
      %p132 = por %p130, %p131
      %p133 = scmp.ne.s32.totalorder %s119, %s120
      %p134 = scmp.eq.s32.totalorder %s22, 5
      %p135 = por %p133, %p134
      %p137 = scmp.ne.s32.totalorder %s120, %s136
      %p138 = scmp.eq.s32.totalorder %s22, 0
      %p139 = por %p137, %p138
      %p140 = scmp.le.s32.totalorder 1, %s16
      %p141 = scmp.lt.s32.totalorder %s16, 7
      %p142 = pnand %p140, %p141
      %p143 = pneg %p142
      // Predicated region
      $region9: #{tpu_custom_call.1} parent=5 // pred_check
        _
      $region10: #{tpu_custom_call.1} parent=5 // pred_check_branch
        %145 = sbr.rel (%p142) target = $region12
      $region11: #{tpu_custom_call.1} parent=5 // pred_region
        %s146 = ssub.s32 %s16, 1
        // Predicated region
        $region13: #{tpu_custom_call.1} parent=11 // pred_check
          %p147 = pneg %p83
        $region14: #{tpu_custom_call.1} parent=11 // pred_check_branch
          %149 = sbr.rel (%p147) target = $region16
        $region15: #{tpu_custom_call.1} parent=11 // pred_region
          %s151 = ssub.s32 4096, 4096
          %152 = vsyncadd [#allocation8], %s151
          %s153 = sshll.u32 [#allocation7], 4
          %s154 = int_to_ptr.vmem [resolvable:$true] %s153
          %159 = dma.hbm_to_vmem [thread:$0]  %s1, 4096, %s154, [#allocation8], 128, 128, 8
        $region16: #{tpu_custom_call.1} parent=11 // pred_fallthru
          _
        // Predicated region
        $region17: #{tpu_custom_call.1} parent=11 // pred_check
          %p160 = pneg %p104
        $region18: #{tpu_custom_call.1} parent=11 // pred_check_branch
          %162 = sbr.rel (%p160) target = $region20
        $region19: #{tpu_custom_call.1} parent=11 // pred_region
          %s164 = ssub.s32 2048, 2048
          %165 = vsyncadd [#allocation8], %s164
          %s166 = sshll.u32 [#allocation9], 4
          %s167 = int_to_ptr.vmem [resolvable:$true] %s166
          %172 = dma.hbm_to_vmem [thread:$0]  %s2, 2048, %s167, [#allocation8], 64, 64, 4
        $region20: #{tpu_custom_call.1} parent=11 // pred_fallthru
          _
      $region12: #{tpu_custom_call.1} parent=5 // pred_fallthru
        _
      %p173 = scmp.lt.s32.totalorder %s16, 6
      // Predicated region
      $region21: #{tpu_custom_call.1} parent=5 // pred_check
        %p174 = pneg %p173
      $region22: #{tpu_custom_call.1} parent=5 // pred_check_branch
        %176 = sbr.rel (%p174) target = $region24
      $region23: #{tpu_custom_call.1} parent=5 // pred_region
        // Predicated region
        $region25: #{tpu_custom_call.1} parent=23 // pred_check
          %p177 = pneg %p56
        $region26: #{tpu_custom_call.1} parent=23 // pred_check_branch
          %179 = sbr.rel (%p177) target = $region28
        $region27: #{tpu_custom_call.1} parent=23 // pred_region
          %s180 = sand.u32 %s46, 1
          %s181 = scalar_lea.sflag [#allocation5], %s180
          %s182 = sand.u32 %s46, 1
          %s183 = smul.addr %s182, 16
          %s184 = scalar_lea.vmem [#allocation4], %s183
          %s185 = ssub.s32 1, %s23
          %s186 = smul.u32 %s185, %s24
          %s187 = smul.u32 %s23, 2
          %s188 = sadd.s32 %s186, %s187
          %s190 = ssub.s32 256, 256
          %191 = vsyncadd %s181, %s190
          %s192 = smul.addr %s188, 16
          %s193 = smul.addr %s192, 128
          %s194 = scalar_lea.hbm %s0, %s193
          %s196 = sshll.u32 %s184, 4
          %s197 = int_to_ptr.vmem [resolvable:$true] %s196
          %199 = dma.hbm_to_vmem [thread:$0]  %s194, 256, %s197, %s181
        $region28: #{tpu_custom_call.1} parent=23 // pred_fallthru
          _
      $region24: #{tpu_custom_call.1} parent=5 // pred_fallthru
        _
      %p200 = scmp.le.s32.totalorder 1, %s16
      %p201 = scmp.lt.s32.totalorder %s16, 7
      %p202 = pnand %p200, %p201
      %p203 = pneg %p202
      // Predicated region
      $region29: #{tpu_custom_call.1} parent=5 // pred_check
        _
      $region30: #{tpu_custom_call.1} parent=5 // pred_check_branch
        %205 = sbr.rel (%p202) target = $region32
      $region31: #{tpu_custom_call.1} parent=5 // pred_region
        %s206 = ssub.s32 %s16, 1
        %s207 = sand.u32 %s49, 1
        %s208 = scalar_lea.sflag [#allocation5], %s207
        %s209 = sand.u32 %s49, 1
        %s210 = smul.addr %s209, 16
        %s211 = scalar_lea.vmem [#allocation4], %s210
        // Predicated region
        $region33: #{tpu_custom_call.1} parent=31 // pred_check
          %p212 = pneg %p62
        $region34: #{tpu_custom_call.1} parent=31 // pred_check_branch
          %214 = sbr.rel (%p212) target = $region36
        $region35: #{tpu_custom_call.1} parent=31 // pred_region
          %215 = dma.done %s208, 256
        $region36: #{tpu_custom_call.1} parent=31 // pred_fallthru
          _
        // Predicated region
        $region37: #{tpu_custom_call.1} parent=31 // pred_check
          %p216 = pneg %p83
        $region38: #{tpu_custom_call.1} parent=31 // pred_check_branch
          %218 = sbr.rel (%p216) target = $region40
        $region39: #{tpu_custom_call.1} parent=31 // pred_region
          %219 = dma.done [#allocation8], 4096
        $region40: #{tpu_custom_call.1} parent=31 // pred_fallthru
          _
        // Predicated region
        $region41: #{tpu_custom_call.1} parent=31 // pred_check
          %p220 = pneg %p104
        $region42: #{tpu_custom_call.1} parent=31 // pred_check_branch
          %222 = sbr.rel (%p220) target = $region44
        $region43: #{tpu_custom_call.1} parent=31 // pred_region
          %223 = dma.done [#allocation8], 2048
        $region44: #{tpu_custom_call.1} parent=31 // pred_fallthru
          _
        %s224 = sand.u32 %s49, 1
        %s225 = scalar_lea.sflag [#allocation5], %s224
        %s226 = sand.u32 %s49, 1
        %s227 = smul.addr %s226, 16
        %s228 = scalar_lea.vmem [#allocation4], %s227
        %p229 = pneg %p62
        %p230 = pneg %p59
        %p231 = pneg %p83
        %p232 = pneg %p80
        %p233 = pneg %p104
        %p234 = pneg %p101
        %p235 = pneg %p132
        %p236 = pneg %p129
        %s237 = sand.u32 %s119, 1
        %s238 = scalar_lea.sflag [#allocation6], %s237
        %s239 = sand.u32 %s119, 1
        %s240 = smul.addr %s239, 8
        %s241 = scalar_lea.vmem [#allocation10], %s240
        %s242 = ssub.s32 1, %s25
        %s243 = smul.u32 %s242, %s26
        %s244 = smul.u32 %s25, 2
        %s245 = sadd.s32 %s243, %s244
        %s246 = smul.u32 %s25, %s26
        %p248 = scmp.eq.s32.totalorder %s25, 0
        // Predicated region
        $region45: #{tpu_custom_call.1} parent=31 // pred_check
          %p249 = pneg %p248
        $region46: #{tpu_custom_call.1} parent=31 // pred_check_branch
          %251 = sbr.rel (%p249) target = $region48
        $region47: #{tpu_custom_call.1} parent=31 // pred_region
          %p252 = scmp.eq.s32.totalorder %s26, 0
          // Predicated region
          $region49: #{tpu_custom_call.1} parent=47 // pred_check
            %p253 = pneg %p252
          $region50: #{tpu_custom_call.1} parent=47 // pred_check_branch
            %255 = sbr.rel (%p253) target = $region52
          $region51: #{tpu_custom_call.1} parent=47 // pred_region
            %256 = vst [vmem:[#allocation2] sm:$0xff] 0.0
            %257 = vst [vmem:[#allocation2 + $0x8] sm:$0xff] 0.0
          $region52: #{tpu_custom_call.1} parent=47 // pred_fallthru
            _
          %v258 = vld [vmem:[%s211] sm:$0xff]
          %v259 = vld [vmem:[%s211 + $0x8] sm:$0xff]
          %v260 = vpack.c.bf16 %v258, %v258
          %v261 = vpack.c.bf16 %v259, %v259
          %v262 = vld [vmem:[#allocation7] sm:$0xff]
          %v263 = vld [vmem:[#allocation7 + $0x8] sm:$0xff]
          %v264 = vld [vmem:[#allocation7 + $0x10] sm:$0xff]
          %v265 = vld [vmem:[#allocation7 + $0x18] sm:$0xff]
          %v266 = vld [vmem:[#allocation7 + $0x20] sm:$0xff]
          %v267 = vld [vmem:[#allocation7 + $0x28] sm:$0xff]
          %v268 = vld [vmem:[#allocation7 + $0x30] sm:$0xff]
          %v269 = vld [vmem:[#allocation7 + $0x38] sm:$0xff]
          %v270 = vld [vmem:[#allocation7 + $0x40] sm:$0xff]
          %v271 = vld [vmem:[#allocation7 + $0x48] sm:$0xff]
          %v272 = vld [vmem:[#allocation7 + $0x50] sm:$0xff]
          %v273 = vld [vmem:[#allocation7 + $0x58] sm:$0xff]
          %v274 = vld [vmem:[#allocation7 + $0x60] sm:$0xff]
          %v275 = vld [vmem:[#allocation7 + $0x68] sm:$0xff]
          %v276 = vld [vmem:[#allocation7 + $0x70] sm:$0xff]
          %v277 = vld [vmem:[#allocation7 + $0x78] sm:$0xff]
          %v278 = vld [vmem:[#allocation7 + $0x80] sm:$0xff]
          %v279 = vld [vmem:[#allocation7 + $0x88] sm:$0xff]
          %v280 = vld [vmem:[#allocation7 + $0x90] sm:$0xff]
          %v281 = vld [vmem:[#allocation7 + $0x98] sm:$0xff]
          %v282 = vld [vmem:[#allocation7 + $0xa0] sm:$0xff]
          %v283 = vld [vmem:[#allocation7 + $0xa8] sm:$0xff]
          %v284 = vld [vmem:[#allocation7 + $0xb0] sm:$0xff]
          %v285 = vld [vmem:[#allocation7 + $0xb8] sm:$0xff]
          %v286 = vld [vmem:[#allocation7 + $0xc0] sm:$0xff]
          %v287 = vld [vmem:[#allocation7 + $0xc8] sm:$0xff]
          %v288 = vld [vmem:[#allocation7 + $0xd0] sm:$0xff]
          %v289 = vld [vmem:[#allocation7 + $0xd8] sm:$0xff]
          %v290 = vld [vmem:[#allocation7 + $0xe0] sm:$0xff]
          %v291 = vld [vmem:[#allocation7 + $0xe8] sm:$0xff]
          %v292 = vld [vmem:[#allocation7 + $0xf0] sm:$0xff]
          %v293 = vld [vmem:[#allocation7 + $0xf8] sm:$0xff]
          %v326 = vunpack.c.l.b16 %v262
          %v327 = vunpack.c.h.b16 %v262
          %v328 = vunpack.c.l.b16 %v263
          %v329 = vunpack.c.h.b16 %v263
          %v330 = vunpack.c.l.b16 %v264
          %v331 = vunpack.c.h.b16 %v264
          %v332 = vunpack.c.l.b16 %v265
          %v333 = vunpack.c.h.b16 %v265
          %v334 = vunpack.c.l.b16 %v266
          %v335 = vunpack.c.h.b16 %v266
          %v336 = vunpack.c.l.b16 %v267
          %v337 = vunpack.c.h.b16 %v267
          %v338 = vunpack.c.l.b16 %v268
          %v339 = vunpack.c.h.b16 %v268
          %v340 = vunpack.c.l.b16 %v269
          %v341 = vunpack.c.h.b16 %v269
          %v342 = vunpack.c.l.b16 %v270
          %v343 = vunpack.c.h.b16 %v270
          %v344 = vunpack.c.l.b16 %v271
          %v345 = vunpack.c.h.b16 %v271
          %v346 = vunpack.c.l.b16 %v272
          %v347 = vunpack.c.h.b16 %v272
          %v348 = vunpack.c.l.b16 %v273
          %v349 = vunpack.c.h.b16 %v273
          %v350 = vunpack.c.l.b16 %v274
          %v351 = vunpack.c.h.b16 %v274
          %v352 = vunpack.c.l.b16 %v275
          %v353 = vunpack.c.h.b16 %v275
          %v354 = vunpack.c.l.b16 %v276
          %v355 = vunpack.c.h.b16 %v276
          %v356 = vunpack.c.l.b16 %v277
          %v357 = vunpack.c.h.b16 %v277
          %v358 = vunpack.c.l.b16 %v278
          %v359 = vunpack.c.h.b16 %v278
          %v360 = vunpack.c.l.b16 %v279
          %v361 = vunpack.c.h.b16 %v279
          %v362 = vunpack.c.l.b16 %v280
          %v363 = vunpack.c.h.b16 %v280
          %v364 = vunpack.c.l.b16 %v281
          %v365 = vunpack.c.h.b16 %v281
          %v366 = vunpack.c.l.b16 %v282
          %v367 = vunpack.c.h.b16 %v282
          %v368 = vunpack.c.l.b16 %v283
          %v369 = vunpack.c.h.b16 %v283
          %v370 = vunpack.c.l.b16 %v284
          %v371 = vunpack.c.h.b16 %v284
          %v372 = vunpack.c.l.b16 %v285
          %v373 = vunpack.c.h.b16 %v285
          %v374 = vunpack.c.l.b16 %v286
          %v375 = vunpack.c.h.b16 %v286
          %v376 = vunpack.c.l.b16 %v287
          %v377 = vunpack.c.h.b16 %v287
          %v378 = vunpack.c.l.b16 %v288
          %v379 = vunpack.c.h.b16 %v288
          %v380 = vunpack.c.l.b16 %v289
          %v381 = vunpack.c.h.b16 %v289
          %v382 = vunpack.c.l.b16 %v290
          %v383 = vunpack.c.h.b16 %v290
          %v384 = vunpack.c.l.b16 %v291
          %v385 = vunpack.c.h.b16 %v291
          %v386 = vunpack.c.l.b16 %v292
          %v387 = vunpack.c.h.b16 %v292
          %v388 = vunpack.c.l.b16 %v293
          %v389 = vunpack.c.h.b16 %v293
          %v390 = vpack.c.b16 %v328, %v326
          %v391 = vpack.c.b16 %v329, %v327
          %v392 = vpack.c.b16 %v332, %v330
          %v393 = vpack.c.b16 %v333, %v331
          %v394 = vpack.c.b16 %v336, %v334
          %v395 = vpack.c.b16 %v337, %v335
          %v396 = vpack.c.b16 %v340, %v338
          %v397 = vpack.c.b16 %v341, %v339
          %v398 = vpack.c.b16 %v344, %v342
          %v399 = vpack.c.b16 %v345, %v343
          %v400 = vpack.c.b16 %v348, %v346
          %v401 = vpack.c.b16 %v349, %v347
          %v402 = vpack.c.b16 %v352, %v350
          %v403 = vpack.c.b16 %v353, %v351
          %v404 = vpack.c.b16 %v356, %v354
          %v405 = vpack.c.b16 %v357, %v355
          %v406 = vpack.c.b16 %v360, %v358
          %v407 = vpack.c.b16 %v361, %v359
          %v408 = vpack.c.b16 %v364, %v362
          %v409 = vpack.c.b16 %v365, %v363
          %v410 = vpack.c.b16 %v368, %v366
          %v411 = vpack.c.b16 %v369, %v367
          %v412 = vpack.c.b16 %v372, %v370
          %v413 = vpack.c.b16 %v373, %v371
          %v414 = vpack.c.b16 %v376, %v374
          %v415 = vpack.c.b16 %v377, %v375
          %v416 = vpack.c.b16 %v380, %v378
          %v417 = vpack.c.b16 %v381, %v379
          %v418 = vpack.c.b16 %v384, %v382
          %v419 = vpack.c.b16 %v385, %v383
          %v420 = vpack.c.b16 %v388, %v386
          %v421 = vpack.c.b16 %v389, %v387
          %454 = vmatprep.subr.bf16.mxu0 %v405
          %455 = vmatpush1.bf16.msra.mxu0 %v404
          %456 = vmatprep.subr.bf16.mxu0 %v403
          %457 = vmatpush1.bf16.msra.mxu0 %v402
          %458 = vmatprep.subr.bf16.mxu0 %v401
          %459 = vmatpush1.bf16.msra.mxu0 %v400
          %460 = vmatprep.subr.bf16.mxu0 %v399
          %461 = vmatpush1.bf16.msra.mxu0 %v398
          %462 = vmatprep.subr.bf16.mxu0 %v397
          %463 = vmatpush1.bf16.msra.mxu0 %v396
          %464 = vmatprep.subr.bf16.mxu0 %v395
          %465 = vmatpush1.bf16.msra.mxu0 %v394
          %466 = vmatprep.subr.bf16.mxu0 %v393
          %467 = vmatpush1.bf16.msra.mxu0 %v392
          %468 = vmatprep.subr.bf16.mxu0 %v391
          %469 = vmatpush1.bf16.msra.mxu0 %v390
          %470 = vmatprep.subr.bf16.mxu0 %v421
          %471 = vmatpush2.bf16.msra.mxu0 %v420
          %472 = vmatprep.subr.bf16.mxu0 %v419
          %473 = vmatpush2.bf16.msra.mxu0 %v418
          %474 = vmatprep.subr.bf16.mxu0 %v417
          %475 = vmatpush2.bf16.msra.mxu0 %v416
          %476 = vmatprep.subr.bf16.mxu0 %v415
          %477 = vmatpush2.bf16.msra.mxu0 %v414
          %478 = vmatprep.subr.bf16.mxu0 %v413
          %479 = vmatpush2.bf16.msra.mxu0 %v412
          %480 = vmatprep.subr.bf16.mxu0 %v411
          %481 = vmatpush2.bf16.msra.mxu0 %v410
          %482 = vmatprep.subr.bf16.mxu0 %v409
          %483 = vmatpush2.bf16.msra.mxu0 %v408
          %484 = vmatprep.subr.bf16.mxu0 %v407
          %485 = vmatpush2.bf16.msra.mxu0 %v406
          %486 = vmatprep.mubr.bf16.mxu0 %v261
          %487 = vmatmul.mubr.bf16.gmra.mxu0 %v260
          %v488 = vpop.f32.mrf.mxu0
          %v489 = vadd.f32 0.0, %v488
          %v490 = vpop.f32.mrf.mxu0
          %v491 = vadd.f32 0.0, %v490
          %v492 = vpop.f32.mrf.mxu0
          %v493 = vpop.f32.mrf.mxu0
          %494 = vdwg.mxu0
          %s495 = smul.u32 %s26, 8
          %s496 = sshra.s32 %s495, 3
          %s497 = sand.u32 %s495, 7
          %s498 = smul.u32 %s496, 2
          %s499 = smul.addr %s498, 8
          %s500 = scalar_lea.vmem [#allocation3], %s499
          %501 = vst [vmem:[%s500] sm:$0xff] %v489
          %502 = vst [vmem:[%s500 + $0x8] sm:$0xff] %v491
          %v503 = vlaneseq
          %v504 = vshrl.u32 %v503, 7
          %v505 = vstv %s495
          %v506 = vadd.s32 %v505, %v504
          %vm507 = vcmp.lt.s32.totalorder %v506, 20
          %v508 = vsel %vm507, 1, 0
          %vm509 = vcmp.eq.s32.totalorder %v508, 1
          %v510 = vsel %vm509, %v489, 0.0
          %v511 = vsel %vm509, %v491, 0.0
          %v512 = vrot.slane %v510, 4
          %v513 = vadd.f32 %v510, %v512
          %v514 = vrot.slane %v513, 2
          %v515 = vadd.f32 %v513, %v514
          %v516 = vrot.slane %v515, 1
          %v517 = vadd.f32 %v515, %v516
          %v518 = vrot.slane %v511, 4
          %v519 = vadd.f32 %v511, %v518
          %v520 = vrot.slane %v519, 2
          %v521 = vadd.f32 %v519, %v520
          %v522 = vrot.slane %v521, 1
          %v523 = vadd.f32 %v521, %v522
          %v524 = vmul.f32 %v510, %v510
          %v525 = vmul.f32 %v511, %v511
          %v526 = vrot.slane %v524, 4
          %v527 = vadd.f32 %v524, %v526
          %v528 = vrot.slane %v527, 2
          %v529 = vadd.f32 %v527, %v528
          %v530 = vrot.slane %v529, 1
          %v531 = vadd.f32 %v529, %v530
          %v532 = vrot.slane %v525, 4
          %v533 = vadd.f32 %v525, %v532
          %v534 = vrot.slane %v533, 2
          %v535 = vadd.f32 %v533, %v534
          %v536 = vrot.slane %v535, 1
          %v537 = vadd.f32 %v535, %v536
          %vm538 = vcmask 1040384
          %v539 = vsel %vm538, %v517, %v531
          %v540 = vsel %vm538, %v523, %v537
          %v541 = vld [vmem:[#allocation2] sm:$0x3]
          %v542 = vld [vmem:[#allocation2 + $0x8] sm:$0x3]
          %v543 = vadd.f32 %v541, %v539
          %v544 = vadd.f32 %v542, %v540
          %545 = vst [vmem:[#allocation2] sm:$0x3] %v543
          %546 = vst [vmem:[#allocation2 + $0x8] sm:$0x3] %v544
          %p547 = scmp.eq.s32.totalorder %s26, 2
          // Predicated region
          $region53: #{tpu_custom_call.1} parent=47 // pred_check
            %p548 = pneg %p547
          $region54: #{tpu_custom_call.1} parent=47 // pred_check_branch
            %550 = sbr.rel (%p548) target = $region56
          $region55: #{tpu_custom_call.1} parent=47 // pred_region
            %v551 = vld [vmem:[#allocation2] ss:$8 sm:$0x3]
            %v552 = vmul.f32 %v551, 0.05
            %s553 = scalar_lea.vmem [#allocation2], 1
            %v554 = vld [vmem:[%s553] ss:$8 sm:$0x3]
            %v555 = vmul.f32 %v554, 0.05
            %v556 = vmul.f32 %v552, %v552
            %v557 = vsub.f32 %v555, %v556
            %v558 = vlaneseq
            %vm559 = vcmp.ge.s32.totalorder %v558, 0
            %vm560 = vcmp.lt.s32.totalorder %v558, 256
            %vm561 = vmand %vm559, %vm560
            %562 = vst.msk [vmem:[#allocation2] ss:$8 sm:$0x3] %vm561, %v552
            %563 = vst.msk [vmem:[#allocation2] ss:$8 sm:$0x0] %vm561, %v552
            %v564 = vmax.f32 %v557, 0.0
            %v565 = vadd.f32 %v564, 1e-05
            %v566 = vrsqrt.pop %v565
            %567 = vst.msk [vmem:[%s553] ss:$8 sm:$0x3] %vm561, %v566
            %568 = vst.msk [vmem:[%s553] ss:$8 sm:$0x0] %vm561, %v566
          $region56: #{tpu_custom_call.1} parent=47 // pred_fallthru
            _
        $region48: #{tpu_custom_call.1} parent=31 // pred_fallthru
          _
        %p569 = scmp.eq.s32.totalorder %s25, 1
        // Predicated region
        $region57: #{tpu_custom_call.1} parent=31 // pred_check
          %p570 = pneg %p569
        $region58: #{tpu_custom_call.1} parent=31 // pred_check_branch
          %572 = sbr.rel (%p570) target = $region60
        $region59: #{tpu_custom_call.1} parent=31 // pred_region
          %s573 = smul.u32 %s26, 8
          %s574 = sshra.s32 %s573, 3
          %s575 = sand.u32 %s573, 7
          %s576 = smul.u32 %s574, 2
          %s577 = smul.addr %s576, 8
          %s578 = scalar_lea.vmem [#allocation3], %s577
          %v579 = vld [vmem:[%s578] sm:$0xff]
          %v580 = vld [vmem:[%s578 + $0x8] sm:$0xff]
          %v581 = vld [vmem:[#allocation2] ss:$8 sm:$0x3]
          %v583 = vlaneseq
          %v584 = vshrl.u32 %v583, 7
          %v585 = vsub.s32 0, %v584
          %v586 = vrot.slane %v581, %v585
          %v587 = vlaneseq
          %v588 = vshrl.u32 %v587, 7
          %v589 = vsub.s32 1, %v588
          %v590 = vrot.slane %v581, %v589
          %v593 = vsub.f32 %v579, %v586
          %v594 = vsub.f32 %v580, %v590
          %s595 = scalar_lea.vmem [#allocation2], 1
          %v596 = vld [vmem:[%s595] ss:$8 sm:$0x3]
          %v598 = vlaneseq
          %v599 = vshrl.u32 %v598, 7
          %v600 = vsub.s32 0, %v599
          %v601 = vrot.slane %v596, %v600
          %v602 = vlaneseq
          %v603 = vshrl.u32 %v602, 7
          %v604 = vsub.s32 1, %v603
          %v605 = vrot.slane %v596, %v604
          %v608 = vmul.f32 %v593, %v601
          %v609 = vmul.f32 %v594, %v605
          %v610 = vmax.f32 %v608, 0.0
          %v611 = vmax.f32 %v609, 0.0
          %v612 = vpack.c.bf16 %v610, %v610
          %v613 = vpack.c.bf16 %v611, %v611
          %v614 = vld [vmem:[#allocation9] sm:$0xf]
          %v615 = vld [vmem:[#allocation9 + $0x4] sm:$0xf]
          %v616 = vld [vmem:[#allocation9 + $0x8] sm:$0xf]
          %v617 = vld [vmem:[#allocation9 + $0xc] sm:$0xf]
          %v618 = vld [vmem:[#allocation9 + $0x10] sm:$0xf]
          %v619 = vld [vmem:[#allocation9 + $0x14] sm:$0xf]
          %v620 = vld [vmem:[#allocation9 + $0x18] sm:$0xf]
          %v621 = vld [vmem:[#allocation9 + $0x1c] sm:$0xf]
          %v622 = vld [vmem:[#allocation9 + $0x20] sm:$0xf]
          %v623 = vld [vmem:[#allocation9 + $0x24] sm:$0xf]
          %v624 = vld [vmem:[#allocation9 + $0x28] sm:$0xf]
          %v625 = vld [vmem:[#allocation9 + $0x2c] sm:$0xf]
          %v626 = vld [vmem:[#allocation9 + $0x30] sm:$0xf]
          %v627 = vld [vmem:[#allocation9 + $0x34] sm:$0xf]
          %v628 = vld [vmem:[#allocation9 + $0x38] sm:$0xf]
          %v629 = vld [vmem:[#allocation9 + $0x3c] sm:$0xf]
          %v630 = vld [vmem:[#allocation9 + $0x40] sm:$0xf]
          %v631 = vld [vmem:[#allocation9 + $0x44] sm:$0xf]
          %v632 = vld [vmem:[#allocation9 + $0x48] sm:$0xf]
          %v633 = vld [vmem:[#allocation9 + $0x4c] sm:$0xf]
          %v634 = vld [vmem:[#allocation9 + $0x50] sm:$0xf]
          %v635 = vld [vmem:[#allocation9 + $0x54] sm:$0xf]
          %v636 = vld [vmem:[#allocation9 + $0x58] sm:$0xf]
          %v637 = vld [vmem:[#allocation9 + $0x5c] sm:$0xf]
          %v638 = vld [vmem:[#allocation9 + $0x60] sm:$0xf]
          %v639 = vld [vmem:[#allocation9 + $0x64] sm:$0xf]
          %v640 = vld [vmem:[#allocation9 + $0x68] sm:$0xf]
          %v641 = vld [vmem:[#allocation9 + $0x6c] sm:$0xf]
          %v642 = vld [vmem:[#allocation9 + $0x70] sm:$0xf]
          %v643 = vld [vmem:[#allocation9 + $0x74] sm:$0xf]
          %v644 = vld [vmem:[#allocation9 + $0x78] sm:$0xf]
          %v645 = vld [vmem:[#allocation9 + $0x7c] sm:$0xf]
          %v678 = vunpack.c.l.b16 %v614
          %v679 = vunpack.c.l.b16 %v615
          %v680 = vunpack.c.l.b16 %v616
          %v681 = vunpack.c.l.b16 %v617
          %v682 = vunpack.c.l.b16 %v618
          %v683 = vunpack.c.l.b16 %v619
          %v684 = vunpack.c.l.b16 %v620
          %v685 = vunpack.c.l.b16 %v621
          %v686 = vunpack.c.l.b16 %v622
          %v687 = vunpack.c.l.b16 %v623
          %v688 = vunpack.c.l.b16 %v624
          %v689 = vunpack.c.l.b16 %v625
          %v690 = vunpack.c.l.b16 %v626
          %v691 = vunpack.c.l.b16 %v627
          %v692 = vunpack.c.l.b16 %v628
          %v693 = vunpack.c.l.b16 %v629
          %v694 = vunpack.c.l.b16 %v630
          %v695 = vunpack.c.l.b16 %v631
          %v696 = vunpack.c.l.b16 %v632
          %v697 = vunpack.c.l.b16 %v633
          %v698 = vunpack.c.l.b16 %v634
          %v699 = vunpack.c.l.b16 %v635
          %v700 = vunpack.c.l.b16 %v636
          %v701 = vunpack.c.l.b16 %v637
          %v702 = vunpack.c.l.b16 %v638
          %v703 = vunpack.c.l.b16 %v639
          %v704 = vunpack.c.l.b16 %v640
          %v705 = vunpack.c.l.b16 %v641
          %v706 = vunpack.c.l.b16 %v642
          %v707 = vunpack.c.l.b16 %v643
          %v708 = vunpack.c.l.b16 %v644
          %v709 = vunpack.c.l.b16 %v645
          %v710 = vpack.c.b16 %v679, %v678
          %v711 = vpack.c.b16 %v681, %v680
          %v712 = vpack.c.b16 %v683, %v682
          %v713 = vpack.c.b16 %v685, %v684
          %v714 = vpack.c.b16 %v687, %v686
          %v715 = vpack.c.b16 %v689, %v688
          %v716 = vpack.c.b16 %v691, %v690
          %v717 = vpack.c.b16 %v693, %v692
          %v718 = vpack.c.b16 %v695, %v694
          %v719 = vpack.c.b16 %v697, %v696
          %v720 = vpack.c.b16 %v699, %v698
          %v721 = vpack.c.b16 %v701, %v700
          %v722 = vpack.c.b16 %v703, %v702
          %v723 = vpack.c.b16 %v705, %v704
          %v724 = vpack.c.b16 %v707, %v706
          %v725 = vpack.c.b16 %v709, %v708
          %742 = vmatprep.subr.bf16.mxu0 0
          %743 = vmatpush1.bf16.msra.mxu0 %v717
          %744 = vmatprep.subr.bf16.mxu0 0
          %745 = vmatpush1.bf16.msra.mxu0 %v716
          %746 = vmatprep.subr.bf16.mxu0 0
          %747 = vmatpush1.bf16.msra.mxu0 %v715
          %748 = vmatprep.subr.bf16.mxu0 0
          %749 = vmatpush1.bf16.msra.mxu0 %v714
          %750 = vmatprep.subr.bf16.mxu0 0
          %751 = vmatpush1.bf16.msra.mxu0 %v713
          %752 = vmatprep.subr.bf16.mxu0 0
          %753 = vmatpush1.bf16.msra.mxu0 %v712
          %754 = vmatprep.subr.bf16.mxu0 0
          %755 = vmatpush1.bf16.msra.mxu0 %v711
          %756 = vmatprep.subr.bf16.mxu0 0
          %757 = vmatpush1.bf16.msra.mxu0 %v710
          %758 = vmatprep.subr.bf16.mxu0 0
          %759 = vmatpush2.bf16.msra.mxu0 %v725
          %760 = vmatprep.subr.bf16.mxu0 0
          %761 = vmatpush2.bf16.msra.mxu0 %v724
          %762 = vmatprep.subr.bf16.mxu0 0
          %763 = vmatpush2.bf16.msra.mxu0 %v723
          %764 = vmatprep.subr.bf16.mxu0 0
          %765 = vmatpush2.bf16.msra.mxu0 %v722
          %766 = vmatprep.subr.bf16.mxu0 0
          %767 = vmatpush2.bf16.msra.mxu0 %v721
          %768 = vmatprep.subr.bf16.mxu0 0
          %769 = vmatpush2.bf16.msra.mxu0 %v720
          %770 = vmatprep.subr.bf16.mxu0 0
          %771 = vmatpush2.bf16.msra.mxu0 %v719
          %772 = vmatprep.subr.bf16.mxu0 0
          %773 = vmatpush2.bf16.msra.mxu0 %v718
          %774 = vmatprep.mubr.bf16.mxu0 %v613
          %775 = vmatmul.mubr.bf16.gmra.mxu0 %v612
          %v776 = vpop.f32.mrf.mxu0
          %v777 = vadd.f32 0.0, %v776
          %v778 = vpop.f32.mrf.mxu0
          %v779 = vpop.f32.mrf.mxu0
          %v780 = vpop.f32.mrf.mxu0
          %781 = vdwg.mxu0
          %v782 = vmul.f32 %v777, %v777
          %783 = vadd.xlane.f32.xlu0 %v782
          %v784 = vpop.xlane.xlu0 %783
          %v785 = vmax.f32 %v784, 1e-24
          %v786 = vrsqrt.pop %v785
          %v787 = vmul.f32 %v777, %v786
          %788 = vst [vmem:[%s241] sm:$0xff] %v787
        $region60: #{tpu_custom_call.1} parent=31 // pred_fallthru
          _
        %s789 = sand.u32 %s119, 1
        %s790 = scalar_lea.sflag [#allocation6], %s789
        %s791 = sand.u32 %s119, 1
        %s792 = smul.addr %s791, 8
        %s793 = scalar_lea.vmem [#allocation10], %s792
        // Predicated region
        $region61: #{tpu_custom_call.1} parent=31 // pred_check
          %p794 = pneg %p129
        $region62: #{tpu_custom_call.1} parent=31 // pred_check_branch
          %796 = sbr.rel (%p794) target = $region64
        $region63: #{tpu_custom_call.1} parent=31 // pred_region
          %s797 = smul.u32 %s25, %s26
          %s799 = ssub.s32 128, 128
          %800 = vsyncadd %s790, %s799
          %s801 = smul.addr %s797, 128
          %s802 = scalar_lea.hbm %s3, %s801
          %s804 = sshll.u32 %s793, 4
          %s805 = int_to_ptr.vmem [resolvable:$true] %s804
          %807 = dma.vmem_to_hbm [thread:$0]  %s805, 128, %s802, %s790
        $region64: #{tpu_custom_call.1} parent=31 // pred_fallthru
          _
      $region32: #{tpu_custom_call.1} parent=5 // pred_fallthru
        _
      %p808 = scmp.le.s32.totalorder 2, %s16
      // Predicated region
      $region65: #{tpu_custom_call.1} parent=5 // pred_check
        %p809 = pneg %p808
      $region66: #{tpu_custom_call.1} parent=5 // pred_check_branch
        %811 = sbr.rel (%p809) target = $region68
      $region67: #{tpu_custom_call.1} parent=5 // pred_region
        %s812 = ssub.s32 %s16, 2
        // Predicated region
        $region69: #{tpu_custom_call.1} parent=67 // pred_check
          %p813 = pneg %p135
        $region70: #{tpu_custom_call.1} parent=67 // pred_check_branch
          %815 = sbr.rel (%p813) target = $region72
        $region71: #{tpu_custom_call.1} parent=67 // pred_region
          %s816 = sand.u32 %s120, 1
          %s817 = scalar_lea.sflag [#allocation6], %s816
          %s818 = sand.u32 %s120, 1
          %s819 = smul.addr %s818, 8
          %s820 = scalar_lea.vmem [#allocation10], %s819
          %821 = dma.done %s817, 128
        $region72: #{tpu_custom_call.1} parent=67 // pred_fallthru
          _
      $region68: #{tpu_custom_call.1} parent=5 // pred_fallthru
        _
    $region6: #{tpu_custom_call.1} parent=1 // loop_footer
      %s20 = sadd.s32 1, %s16
    $region7: #{tpu_custom_call.1} parent=1 // loop_footer_branch
      %15 = sbr.rel target = $region3
    $region8: #{tpu_custom_call.1} parent=1 // loop_exit
      _
    %822 = vsyncpa [#allocation5], 1
    %s823 = scalar_lea.sflag [#allocation5], 1
    %824 = vsyncpa %s823, 1
    %825 = vsyncpa [#allocation8], 1
    %826 = vsyncpa [#allocation6], 1
    %s827 = scalar_lea.sflag [#allocation6], 1
    %828 = vsyncpa %s827, 1

</llo_original>
